<compile_context>
chip_gen: v7x
topology: tpu7x:2x2x1
jax: 0.10.0
libtpu: 0.0.40
codegen_flags: <defaults>
</compile_context>

<pallas_src>
import functools
import math

import jax
import jax.numpy as jnp
from jax import lax
from jax.experimental import pallas as pl
from jax.experimental.pallas import tpu as pltpu

N_GROUPS = 32
EPS = 1e-6
NEG_INF = -1e30


def _attend_one_image(x, mavg, gamma, beta, bout, w_qkv, b_qkv, w_out,
                      attn_bias, *, n_heads, d_head, per_head):
    """x: (C, HW) f32 (channels on sublanes, spatial on lanes)."""
    c, hw = x.shape

    # ---- GroupNorm(32, C, eps=1e-6), two-pass variance ---------------------
    # mavg[i, j] = 1/(cg*HW) if channels i, j share a group else 0 (host-built,
    # hoisted out of the grid body).
    s1 = jnp.sum(x, axis=1, keepdims=True)                              # (C, 1)
    mean_c = jnp.dot(mavg, s1, preferred_element_type=jnp.float32)      # (C, 1)
    d = x - mean_c
    s2 = jnp.sum(d * d, axis=1, keepdims=True)                          # (C, 1)
    var_c = jnp.dot(mavg, s2, preferred_element_type=jnp.float32)       # (C, 1)
    xn = d * lax.rsqrt(var_c + EPS) * gamma + beta

    # ---- fused qkv 1x1 conv: one (3C, C) @ (C, HW) bf16 matmul -------------
    # 1/sqrt(d_head) is pre-folded into the q rows of w_qkv / b_qkv.
    qkv = jnp.dot(w_qkv, xn.astype(jnp.bfloat16),
                  preferred_element_type=jnp.float32) + b_qkv            # (3C, HW)
    q = qkv[0:c]            # sublane-aligned slices (C % 8 == 0)
    k = qkv[c:2 * c]
    v = qkv[2 * c:3 * c]

    if per_head:
        # Per-head batched attention: (H, dh, HW) x (H, dh, HW) -> (H, dh, dh).
        # Reshape is free when d_head % 8 == 0 (whole sublane tiles per head).
        qh = q.reshape(n_heads, d_head, hw).astype(jnp.bfloat16)
        kh = k.reshape(n_heads, d_head, hw).astype(jnp.bfloat16)
        vh = v.reshape(n_heads, d_head, hw).astype(jnp.bfloat16)
        scores = lax.dot_general(qh, kh, (((2,), (2,)), ((0,), (0,))),
                                 preferred_element_type=jnp.float32)
        m = jnp.max(scores, axis=-1, keepdims=True)
        p = jnp.exp(scores - m)                                          # f32 softmax
        attn = p * pl.reciprocal(jnp.sum(p, axis=-1, keepdims=True),
                                 approx=True)
        h_ = lax.dot_general(attn.astype(jnp.bfloat16), vh,
                             (((2,), (1,)), ((0,), (0,))),
                             preferred_element_type=jnp.float32)         # (H, dh, HW)
        h_ = h_.reshape(c, hw)
    else:
        # Full-width (C, C) scores + additive block-diagonal head bias
        # (host-precomputed; 0 within a head, -1e30 across heads).
        scores = lax.dot_general(q.astype(jnp.bfloat16),
                                 k.astype(jnp.bfloat16),
                                 (((1,), (1,)), ((), ())),
                                 preferred_element_type=jnp.float32)     # (C, C)
        scores = scores + attn_bias
        m = jnp.max(scores, axis=-1, keepdims=True)
        p = jnp.exp(scores - m)
        attn = p * pl.reciprocal(jnp.sum(p, axis=-1, keepdims=True),
                                 approx=True)
        h_ = jnp.dot(attn.astype(jnp.bfloat16), v.astype(jnp.bfloat16),
                     preferred_element_type=jnp.float32)                 # (C, HW)

    out = jnp.dot(w_out, h_.astype(jnp.bfloat16),
                  preferred_element_type=jnp.float32) + bout
    return x + out


def spatial_self_attn_kernel(*refs, n_heads, d_head, per_head):
    if per_head:
        x_ref, mavg_ref, vecs_ref, wqkv_ref, bqkv_ref, wout_ref, o_ref = refs
        attn_bias = None
    else:
        (x_ref, mavg_ref, vecs_ref, wqkv_ref, bqkv_ref, wout_ref,
         bias_ref, o_ref) = refs
        attn_bias = bias_ref[...]

    # Resident constants / weights: load once per grid step, outside the loop.
    mavg = mavg_ref[...]
    gamma = vecs_ref[:, 0:1]
    beta = vecs_ref[:, 1:2]
    bout = vecs_ref[:, 2:3]
    w_qkv = wqkv_ref[...]
    b_qkv = bqkv_ref[...]
    w_out = wout_ref[...]

    b_blk = x_ref.shape[0]
    for bi in range(b_blk):        # static unroll; b_blk is small (<= 8)
        o_ref[bi] = _attend_one_image(
            x_ref[bi], mavg, gamma, beta, bout, w_qkv, b_qkv, w_out, attn_bias,
            n_heads=n_heads, d_head=d_head, per_head=per_head)


def spatial_self_attention(x_nchw, params, n_heads, *, b_blk=None,
                           per_head=None):
    """x_nchw: (B, C, H, W) float32.  Returns (B, C, H, W)."""
    b, c, h, w = x_nchw.shape
    hw = h * w
    assert c % n_heads == 0 and c % N_GROUPS == 0
    assert c % 8 == 0 and hw % 128 == 0, "need sublane/lane aligned C, H*W"
    d_head = c // n_heads
    cg = c // N_GROUPS
    scale = 1.0 / math.sqrt(d_head)

    # Adaptive head path: per-head batched matmuls once there are enough heads
    # (and d_head stays tile-aligned); otherwise the full-width masked path.
    if per_head is None:
        per_head = (n_heads >= 4) and (d_head % 8 == 0)
    if per_head:
        assert d_head % 8 == 0

    # Several images per grid step when per-image work is tiny (amortize the
    # ~0.35us per-step overhead), but keep >= 2 grid steps for v7x's two TCs.
    if b_blk is None:
        b_blk = 1
        if c * hw * 4 <= (1 << 20):
            for cand in (8, 4, 2):
                if b % cand == 0 and b // cand >= 2:
                    b_blk = cand
                    break
    assert b % b_blk == 0

    # NCHW reshaped to (B, C, HW) is already the kernel layout: no transposes.
    x = x_nchw.reshape(b, c, hw).astype(jnp.float32)

    # ---- host-side constant / weight prep (hoisted out of the grid body) ---
    ch = jnp.arange(c, dtype=jnp.int32)
    same_group = (ch[:, None] // cg) == (ch[None, :] // cg)
    mavg = jnp.where(same_group, 1.0 / (cg * hw), 0.0).astype(jnp.float32)

    gamma = params["gamma"].reshape(c, 1).astype(jnp.float32)
    beta = params["beta"].reshape(c, 1).astype(jnp.float32)
    bout = params["b_out"].reshape(c, 1).astype(jnp.float32)
    vecs = jnp.concatenate(
        [gamma, beta, bout, jnp.zeros((c, 5), jnp.float32)], axis=1)      # (C, 8)

    w_qkv = params["w_qkv"].reshape(3 * c, c).astype(jnp.float32)
    b_qkv = params["b_qkv"].reshape(3 * c).astype(jnp.float32)
    qkv_scale = jnp.concatenate([jnp.full((c,), scale, jnp.float32),
                                 jnp.ones((2 * c,), jnp.float32)])
    w_qkv_s = (w_qkv * qkv_scale[:, None]).astype(jnp.bfloat16)           # (3C, C)
    b_qkv_s = (b_qkv * qkv_scale).reshape(3 * c, 1).astype(jnp.float32)   # (3C, 1)
    w_out = params["w_out"].reshape(c, c).astype(jnp.bfloat16)

    operands = [x, mavg, vecs, w_qkv_s, b_qkv_s, w_out]
    in_specs = [
        pl.BlockSpec((b_blk, c, hw), lambda i: (i, 0, 0)),   # x
        pl.BlockSpec((c, c), lambda i: (0, 0)),              # mavg (f32)
        pl.BlockSpec((c, 8), lambda i: (0, 0)),              # gamma/beta/b_out
        pl.BlockSpec((3 * c, c), lambda i: (0, 0)),          # fused W_qkv (bf16)
        pl.BlockSpec((3 * c, 1), lambda i: (0, 0)),          # fused b_qkv (scaled)
        pl.BlockSpec((c, c), lambda i: (0, 0)),              # W_out (bf16)
    ]
    if not per_head:
        head = ch // d_head
        attn_bias = jnp.where(head[:, None] == head[None, :],
                              0.0, NEG_INF).astype(jnp.float32)
        operands.append(attn_bias)
        in_specs.append(pl.BlockSpec((c, c), lambda i: (0, 0)))

    kernel = functools.partial(spatial_self_attn_kernel, n_heads=n_heads,
                               d_head=d_head, per_head=per_head)

    # Scoped-VMEM budget: double-buffered x/o blocks + f32/bf16 intermediates
    # + (C,C) score tiles + resident weights, clamped to this chip's capacity
    # (v7x: 64 MiB/TC; v5e/v6e: 128 MiB).
    need = 4 * (4 * b_blk * c * hw + 12 * c * hw + 8 * c * c) \
        + 2 * 4 * c * c + (4 << 20)
    try:
        vmem_cap = int(pltpu.get_tpu_info().vmem_capacity_bytes)
    except Exception:
        vmem_cap = 64 << 20
    vmem_limit = int(min(vmem_cap - (2 << 20), max(32 << 20, need)))

    out = pl.pallas_call(
        kernel,
        out_shape=jax.ShapeDtypeStruct((b, c, hw), jnp.float32),
        grid_spec=pltpu.PrefetchScalarGridSpec(
            num_scalar_prefetch=0,
            grid=(b // b_blk,),
            in_specs=in_specs,
            out_specs=pl.BlockSpec((b_blk, c, hw), lambda i: (i, 0, 0)),
        ),
        compiler_params=pltpu.CompilerParams(
            dimension_semantics=("parallel",),
            vmem_limit_bytes=vmem_limit),
    )(*operands)

    return out.reshape(b, c, h, w)


def reference(x, params, n_heads):
    """Pure-JAX f32 reference mirroring the PyTorch forward (NCHW)."""
    b, c, h, w = x.shape
    d_head = c // n_heads
    xg = x.reshape(b, N_GROUPS, c // N_GROUPS, h, w)
    mean = xg.mean(axis=(2, 3, 4), keepdims=True)
    var = ((xg - mean) ** 2).mean(axis=(2, 3, 4), keepdims=True)
    xn = ((xg - mean) / jnp.sqrt(var + EPS)).reshape(b, c, h, w)
    xn = xn * params["gamma"].reshape(1, c, 1, 1) + params["beta"].reshape(1, c, 1, 1)
    qkv = (jnp.einsum("bchw,oc->bohw", xn, params["w_qkv"].reshape(3 * c, c))
           + params["b_qkv"].reshape(1, 3 * c, 1, 1))
    q, k, v = jnp.split(qkv, 3, axis=1)
    q = q.reshape(b, n_heads, d_head, h * w)
    k = k.reshape(b, n_heads, d_head, h * w)
    v = v.reshape(b, n_heads, d_head, h * w)
    scores = jnp.einsum("bndk,bnek->bnde", q, k) / math.sqrt(d_head)
    attn = jax.nn.softmax(scores, axis=-1)
    o = jnp.einsum("bnde,bnek->bndk", attn, v).reshape(b, c, h, w)
    o = (jnp.einsum("bchw,oc->bohw", o, params["w_out"].reshape(c, c))
         + params["b_out"].reshape(1, c, 1, 1))
    return x + o


if __name__ == "__main__":
    B, C, H, W = 2, 64, 16, 16       # d_embed=64 (multiple of 32 groups)

    key = jax.random.PRNGKey(0)
    kx, kg, kb, kwq, kbq, kwo, kbo = jax.random.split(key, 7)
    x = jax.random.normal(kx, (B, C, H, W), dtype=jnp.float32)
    params = {
        "gamma": 1.0 + 0.05 * jax.random.normal(kg, (C,), dtype=jnp.float32),
        "beta": 0.05 * jax.random.normal(kb, (C,), dtype=jnp.float32),
        # Conv2d 1x1 weights: (out_ch, in_ch, 1, 1) flattened to (out_ch, in_ch).
        "w_qkv": 0.05 * jax.random.normal(kwq, (3 * C, C), dtype=jnp.float32),
        "b_qkv": 0.05 * jax.random.normal(kbq, (3 * C,), dtype=jnp.float32),
        "w_out": 0.05 * jax.random.normal(kwo, (C, C), dtype=jnp.float32),
        "b_out": 0.05 * jax.random.normal(kbo, (C,), dtype=jnp.float32),
    }

    # Path 1: small head count -> full-width masked attention, 1 image/step.
    for n_heads in (2, 4):          # n_heads=4 -> per-head batched path
        out = jax.block_until_ready(spatial_self_attention(x, params, n_heads))
        ref = jax.block_until_ready(reference(x, params, n_heads))
        assert out.shape == (B, C, H, W)
        assert jnp.allclose(out, ref, atol=5e-3, rtol=5e-3), (
            n_heads, float(jnp.max(jnp.abs(out - ref))))

    # Path 2: batch-blocked variant (2 images per grid step, 2 grid steps).
    xb = jax.random.normal(jax.random.PRNGKey(1), (4, C, H, W),
                           dtype=jnp.float32)
    outb = jax.block_until_ready(spatial_self_attention(xb, params, 4))
    refb = jax.block_until_ready(reference(xb, params, 4))
    assert jnp.allclose(outb, refb, atol=5e-3, rtol=5e-3), (
        float(jnp.max(jnp.abs(outb - refb))))

    print("KERNEL_OK")
</pallas_src>

<mosaic_0001>
module attributes {stable_mosaic.version = 11 : i64} {
  func.func @spatial_self_attn_kernel(%arg0: i32, %arg1: memref<1x64x256xf32, #tpu.memory_space<vmem>>, %arg2: memref<64x64xf32, #tpu.memory_space<vmem>>, %arg3: memref<64x8xf32, #tpu.memory_space<vmem>>, %arg4: memref<192x64xbf16, #tpu.memory_space<vmem>>, %arg5: memref<192x1xf32, #tpu.memory_space<vmem>>, %arg6: memref<64x64xbf16, #tpu.memory_space<vmem>>, %arg7: memref<64x64xf32, #tpu.memory_space<vmem>>, %arg8: memref<1x64x256xf32, #tpu.memory_space<vmem>>) attributes {dimension_semantics = [#tpu.dimension_semantics<parallel>], iteration_bounds = array<i64: 2>, scalar_prefetch = 0 : i64, scratch_operands = 0 : i64, tpu.core_type = #tpu.core_type<tc>, window_params = [{transform_indices = @transform_0, window_bounds = array<i64: 1, 64, 256>}, {pipeline_mode = #tpu.pipeline_mode<synchronous>, transform_indices = @transform_1, window_bounds = array<i64: 64, 64>}, {pipeline_mode = #tpu.pipeline_mode<synchronous>, transform_indices = @transform_2, window_bounds = array<i64: 64, 8>}, {pipeline_mode = #tpu.pipeline_mode<synchronous>, transform_indices = @transform_3, window_bounds = array<i64: 192, 64>}, {pipeline_mode = #tpu.pipeline_mode<synchronous>, transform_indices = @transform_4, window_bounds = array<i64: 192, 1>}, {pipeline_mode = #tpu.pipeline_mode<synchronous>, transform_indices = @transform_5, window_bounds = array<i64: 64, 64>}, {pipeline_mode = #tpu.pipeline_mode<synchronous>, transform_indices = @transform_6, window_bounds = array<i64: 64, 64>}, {transform_indices = @transform_7, window_bounds = array<i64: 1, 64, 256>}]} {
    %c0 = arith.constant 0 : index
    %c0_0 = arith.constant 0 : index
    %0 = vector.load %arg7[%c0, %c0_0] : memref<64x64xf32, #tpu.memory_space<vmem>>, vector<64x64xf32>
    %c0_1 = arith.constant 0 : index
    %c0_2 = arith.constant 0 : index
    %1 = vector.load %arg2[%c0_1, %c0_2] : memref<64x64xf32, #tpu.memory_space<vmem>>, vector<64x64xf32>
    %c0_3 = arith.constant 0 : index
    %c0_4 = arith.constant 0 : index
    %2 = vector.load %arg3[%c0_3, %c0_4] : memref<64x8xf32, #tpu.memory_space<vmem>>, vector<64x1xf32>
    %c0_5 = arith.constant 0 : index
    %c1 = arith.constant 1 : index
    %3 = vector.load %arg3[%c0_5, %c1] : memref<64x8xf32, #tpu.memory_space<vmem>>, vector<64x1xf32>
    %c0_6 = arith.constant 0 : index
    %c2 = arith.constant 2 : index
    %4 = vector.load %arg3[%c0_6, %c2] : memref<64x8xf32, #tpu.memory_space<vmem>>, vector<64x1xf32>
    %c0_7 = arith.constant 0 : index
    %c0_8 = arith.constant 0 : index
    %5 = vector.load %arg4[%c0_7, %c0_8] : memref<192x64xbf16, #tpu.memory_space<vmem>>, vector<192x64xbf16>
    %c0_9 = arith.constant 0 : index
    %c0_10 = arith.constant 0 : index
    %6 = vector.load %arg5[%c0_9, %c0_10] : memref<192x1xf32, #tpu.memory_space<vmem>>, vector<192x1xf32>
    %c0_11 = arith.constant 0 : index
    %c0_12 = arith.constant 0 : index
    %7 = vector.load %arg6[%c0_11, %c0_12] : memref<64x64xbf16, #tpu.memory_space<vmem>>, vector<64x64xbf16>
    %c0_13 = arith.constant 0 : index
    %c0_14 = arith.constant 0 : index
    %c0_15 = arith.constant 0 : index
    %8 = vector.load %arg1[%c0_13, %c0_14, %c0_15] : memref<1x64x256xf32, #tpu.memory_space<vmem>>, vector<1x64x256xf32>
    %9 = vector.shape_cast %8 : vector<1x64x256xf32> to vector<64x256xf32>
    %cst = arith.constant dense<0.000000e+00> : vector<64xf32>
    %10 = vector.multi_reduction <add>, %9, %cst [1] : vector<64x256xf32> to vector<64xf32>
    %11 = vector.shape_cast %10 : vector<64xf32> to vector<64x1xf32>
    %cst_16 = arith.constant dense<0.000000e+00> : vector<64x1xf32>
    %12 = tpu.matmul %1, %11, %cst_16 {dimension_numbers = #tpu.dot_dimension_numbers<[1], [0], [0], [1], [0, 0, 1, 1], [], []>} : vector<64x64xf32>, vector<64x1xf32>, vector<64x1xf32> -> vector<64x1xf32>
    %13 = vector.broadcast %12 : vector<64x1xf32> to vector<64x256xf32>
    %14 = arith.subf %9, %13 : vector<64x256xf32>
    %15 = arith.mulf %14, %14 : vector<64x256xf32>
    %cst_17 = arith.constant dense<0.000000e+00> : vector<64xf32>
    %16 = vector.multi_reduction <add>, %15, %cst_17 [1] : vector<64x256xf32> to vector<64xf32>
    %17 = vector.shape_cast %16 : vector<64xf32> to vector<64x1xf32>
    %cst_18 = arith.constant dense<0.000000e+00> : vector<64x1xf32>
    %18 = tpu.matmul %1, %17, %cst_18 {dimension_numbers = #tpu.dot_dimension_numbers<[1], [0], [0], [1], [0, 0, 1, 1], [], []>} : vector<64x64xf32>, vector<64x1xf32>, vector<64x1xf32> -> vector<64x1xf32>
    %cst_19 = arith.constant 9.99999997E-7 : f32
    %19 = vector.broadcast %cst_19 : f32 to vector<64x1xf32>
    %20 = arith.addf %18, %19 : vector<64x1xf32>
    %21 = math.rsqrt %20 : vector<64x1xf32>
    %22 = vector.broadcast %21 : vector<64x1xf32> to vector<64x256xf32>
    %23 = arith.mulf %14, %22 : vector<64x256xf32>
    %24 = vector.broadcast %2 : vector<64x1xf32> to vector<64x256xf32>
    %25 = arith.mulf %23, %24 : vector<64x256xf32>
    %26 = vector.broadcast %3 : vector<64x1xf32> to vector<64x256xf32>
    %27 = arith.addf %25, %26 : vector<64x256xf32>
    %28 = arith.truncf %27 : vector<64x256xf32> to vector<64x256xbf16>
    %cst_20 = arith.constant dense<0.000000e+00> : vector<192x256xf32>
    %29 = tpu.matmul %5, %28, %cst_20 {dimension_numbers = #tpu.dot_dimension_numbers<[1], [0], [0], [1], [0, 0, 1, 1], [], []>} : vector<192x64xbf16>, vector<64x256xbf16>, vector<192x256xf32> -> vector<192x256xf32>
    %30 = vector.broadcast %6 : vector<192x1xf32> to vector<192x256xf32>
    %31 = arith.addf %29, %30 : vector<192x256xf32>
    %32 = vector.extract_strided_slice %31 {offsets = [0, 0], sizes = [64, 256], strides = [1, 1]} : vector<192x256xf32> to vector<64x256xf32>
    %33 = vector.extract_strided_slice %31 {offsets = [64, 0], sizes = [64, 256], strides = [1, 1]} : vector<192x256xf32> to vector<64x256xf32>
    %34 = vector.extract_strided_slice %31 {offsets = [128, 0], sizes = [64, 256], strides = [1, 1]} : vector<192x256xf32> to vector<64x256xf32>
    %35 = arith.truncf %32 : vector<64x256xf32> to vector<64x256xbf16>
    %36 = arith.truncf %33 : vector<64x256xf32> to vector<64x256xbf16>
    %cst_21 = arith.constant dense<0.000000e+00> : vector<64x64xf32>
    %37 = tpu.matmul %35, %36, %cst_21 {dimension_numbers = #tpu.dot_dimension_numbers<[1], [1], [0], [0], [0, 0, 1, 0], [], []>} : vector<64x256xbf16>, vector<64x256xbf16>, vector<64x64xf32> -> vector<64x64xf32>
    %38 = arith.addf %37, %0 : vector<64x64xf32>
    %cst_22 = arith.constant dense<0xFF800000> : vector<64xf32>
    %39 = vector.multi_reduction <maximumf>, %38, %cst_22 [1] : vector<64x64xf32> to vector<64xf32>
    %40 = vector.shape_cast %39 : vector<64xf32> to vector<64x1xf32>
    %41 = vector.broadcast %40 : vector<64x1xf32> to vector<64x64xf32>
    %42 = arith.subf %38, %41 : vector<64x64xf32>
    %43 = math.exp %42 : vector<64x64xf32>
    %cst_23 = arith.constant dense<0.000000e+00> : vector<64xf32>
    %44 = vector.multi_reduction <add>, %43, %cst_23 [1] : vector<64x64xf32> to vector<64xf32>
    %45 = vector.shape_cast %44 : vector<64xf32> to vector<64x1xf32>
    %46 = tpu.reciprocal %45 {approx = true} : vector<64x1xf32> -> vector<64x1xf32>
    %47 = vector.broadcast %46 : vector<64x1xf32> to vector<64x64xf32>
    %48 = arith.mulf %43, %47 : vector<64x64xf32>
    %49 = arith.truncf %48 : vector<64x64xf32> to vector<64x64xbf16>
    %50 = arith.truncf %34 : vector<64x256xf32> to vector<64x256xbf16>
    %cst_24 = arith.constant dense<0.000000e+00> : vector<64x256xf32>
    %51 = tpu.matmul %49, %50, %cst_24 {dimension_numbers = #tpu.dot_dimension_numbers<[1], [0], [0], [1], [0, 0, 1, 1], [], []>} : vector<64x64xbf16>, vector<64x256xbf16>, vector<64x256xf32> -> vector<64x256xf32>
    %52 = arith.truncf %51 : vector<64x256xf32> to vector<64x256xbf16>
    %cst_25 = arith.constant dense<0.000000e+00> : vector<64x256xf32>
    %53 = tpu.matmul %7, %52, %cst_25 {dimension_numbers = #tpu.dot_dimension_numbers<[1], [0], [0], [1], [0, 0, 1, 1], [], []>} : vector<64x64xbf16>, vector<64x256xbf16>, vector<64x256xf32> -> vector<64x256xf32>
    %54 = vector.broadcast %4 : vector<64x1xf32> to vector<64x256xf32>
    %55 = arith.addf %53, %54 : vector<64x256xf32>
    %56 = arith.addf %9, %55 : vector<64x256xf32>
    %c0_26 = arith.constant 0 : index
    %c0_27 = arith.constant 0 : index
    %c0_28 = arith.constant 0 : index
    %57 = vector.load %arg8[%c0_26, %c0_27, %c0_28] : memref<1x64x256xf32, #tpu.memory_space<vmem>>, vector<1x64x256xf32>
    %58 = vector.shape_cast %57 : vector<1x64x256xf32> to vector<64x256xf32>
    %59 = vector.shape_cast %56 : vector<64x256xf32> to vector<1x64x256xf32>
    tpu.vector_store %arg8[%c0_26, %c0_27, %c0_28], %59 {strides = array<i32>} : memref<1x64x256xf32, #tpu.memory_space<vmem>>, vector<1x64x256xf32>,
    return
  }
  func.func @transform_0(%arg0: i32) -> (i32, i32, i32) {
    %c0_i32 = arith.constant 0 : i32
    %c0_i32_0 = arith.constant 0 : i32
    %c0_i32_1 = arith.constant 0 : i32
    return %arg0, %c0_i32, %c0_i32_0 : i32, i32, i32
  }
  func.func @transform_1(%arg0: i32) -> (i32, i32) {
    %c0_i32 = arith.constant 0 : i32
    %c0_i32_0 = arith.constant 0 : i32
    %c0_i32_1 = arith.constant 0 : i32
    return %c0_i32, %c0_i32_0 : i32, i32
  }
  func.func @transform_2(%arg0: i32) -> (i32, i32) {
    %c0_i32 = arith.constant 0 : i32
    %c0_i32_0 = arith.constant 0 : i32
    %c0_i32_1 = arith.constant 0 : i32
    return %c0_i32, %c0_i32_0 : i32, i32
  }
  func.func @transform_3(%arg0: i32) -> (i32, i32) {
    %c0_i32 = arith.constant 0 : i32
    %c0_i32_0 = arith.constant 0 : i32
    %c0_i32_1 = arith.constant 0 : i32
    return %c0_i32, %c0_i32_0 : i32, i32
  }
  func.func @transform_4(%arg0: i32) -> (i32, i32) {
    %c0_i32 = arith.constant 0 : i32
    %c0_i32_0 = arith.constant 0 : i32
    %c0_i32_1 = arith.constant 0 : i32
    return %c0_i32, %c0_i32_0 : i32, i32
  }
  func.func @transform_5(%arg0: i32) -> (i32, i32) {
    %c0_i32 = arith.constant 0 : i32
    %c0_i32_0 = arith.constant 0 : i32
    %c0_i32_1 = arith.constant 0 : i32
    return %c0_i32, %c0_i32_0 : i32, i32
  }
  func.func @transform_6(%arg0: i32) -> (i32, i32) {
    %c0_i32 = arith.constant 0 : i32
    %c0_i32_0 = arith.constant 0 : i32
    %c0_i32_1 = arith.constant 0 : i32
    return %c0_i32, %c0_i32_0 : i32, i32
  }
  func.func @transform_7(%arg0: i32) -> (i32, i32, i32) {
    %c0_i32 = arith.constant 0 : i32
    %c0_i32_0 = arith.constant 0 : i32
    %c0_i32_1 = arith.constant 0 : i32
    return %arg0, %c0_i32, %c0_i32_0 : i32, i32, i32
  }
}

</mosaic_0001>

<llo_original>
// kernel: tpu_custom_call.1
$region0: #{tpu_custom_call.1}
  #allocation0 [shape = 'u32[]', space=smem, size = 0x4, offset = 0x4, fixed_abs, tag = 'smem constant byte address 0x4 - core index']
  #allocation1 [shape = 'u32[144,128]{1,0:T(1,128)}', space=vmem, size = 0x12000, scoped, tag = 'internal scratch']
  %s0 = inlined_call_operand.vmem [shape: f32[2,64,256], index: 0, kind: input, shape index: {}]
  %s1 = inlined_call_operand.vmem [shape: f32[64,64], index: 1, kind: input, shape index: {}]
  %s2 = inlined_call_operand.vmem [shape: f32[64,8], index: 2, kind: input, shape index: {}]
  %s3 = inlined_call_operand.vmem [shape: bf16[192,64], index: 3, kind: input, shape index: {}]
  %s4 = inlined_call_operand.vmem [shape: f32[192,1], index: 4, kind: input, shape index: {}]
  %s5 = inlined_call_operand.vmem [shape: bf16[64,64], index: 5, kind: input, shape index: {}]
  %s6 = inlined_call_operand.vmem [shape: f32[64,64], index: 6, kind: input, shape index: {}]
  %s7 = inlined_call_operand.hbm [shape: f32[2,64,256], index: 7, kind: output, shape index: {}]
  %s8 = sld [smem:[#allocation0]]
  $region61: #{tpu_custom_call.1} parent=0
    _
  %s10 = ssub.s32 1, %s8
  %s11 = scalar_select 0, %s10, %s8
  $region1: #{tpu_custom_call.1} parent=0
    #allocation2 [shape = 'u8[131072]{0}', space=vmem, size = 0x20000, scoped, tag = 'output window, operand 0']
    #allocation3 [shape = 's32[2]{0}', space=sflag, size = 0x8, scoped, tag = 'scoped memory for tpu_custom_call.1']
    %12 = vsyncpa [#allocation3], 0
    %s13 = scalar_lea.sflag [#allocation3], 1
    %14 = vsyncpa %s13, 0
    loop: start=0, step=1, limit=4
    $region2: #{tpu_custom_call.1} parent=1 // loop_pre_header
      _
    $region3: #{tpu_custom_call.1} parent=1 // loop_header
      %s16 = sphi 0, %s20
      %p17 = scmp.ge.s32.totalorder %s16, 4
      %s26 = sphi 0, %s28
      %s29 = sphi 0, %s26
      %s30 = sphi 0, %s29
      %s46 = sphi 0, %s30
      %s50 = sphi 0, %s50
      %s52 = sphi 0, %s50
      %s53 = sphi 0, %s52
      %s67 = sphi 0, %s53
      %s71 = sphi 0, %s71
      %s73 = sphi 0, %s71
      %s74 = sphi 0, %s73
      %s88 = sphi 0, %s74
      %s92 = sphi 0, %s92
      %s94 = sphi 0, %s92
      %s95 = sphi 0, %s94
      %s109 = sphi 0, %s95
      %s113 = sphi 0, %s113
      %s115 = sphi 0, %s113
      %s116 = sphi 0, %s115
      %s130 = sphi 0, %s116
      %s134 = sphi 0, %s134
      %s136 = sphi 0, %s134
      %s137 = sphi 0, %s136
      %s151 = sphi 0, %s137
      %s155 = sphi 0, %s155
      %s157 = sphi 0, %s155
      %s158 = sphi 0, %s157
      %s172 = sphi 0, %s158
      %s178 = sphi 0, %s180
      %s181 = sphi 0, %s178
      %s182 = sphi 0, %s181
      %s198 = sphi 0, %s182
    $region4: #{tpu_custom_call.1} parent=1 // loop_header_branch
      %19 = sbr.rel (%p17) target = $region8
    $region5: #{tpu_custom_call.1} parent=1 // loop_body
      %s21 = ssub.s32 %s16, 1
      %s22 = ssub.s32 %s16, 2
      %s23 = sadd.s32 %s16, 1
      %s24 = ssub.s32 %s16, %s23
      %p25 = scmp.eq.s32.totalorder %s24, 0
      %s27 = sadd.s32 %s26, 1
      %s28 = scalar_select %p25, %s26, %s27
      %p31 = pneg %p25
      %p32 = scmp.eq.s32.totalorder %s16, 1
      %p33 = por %p31, %p32
      %p34 = scmp.ne.s32.totalorder %s26, %s29
      %p35 = scmp.eq.s32.totalorder %s16, 0
      %p36 = por %p34, %p35
      %p37 = scmp.ne.s32.totalorder %s26, %s29
      %p38 = scmp.eq.s32.totalorder %s21, 1
      %p39 = por %p37, %p38
      %p40 = scmp.ne.s32.totalorder %s29, %s30
      %p41 = scmp.eq.s32.totalorder %s21, 0
      %p42 = por %p40, %p41
      %p43 = scmp.ne.s32.totalorder %s29, %s30
      %p44 = scmp.eq.s32.totalorder %s22, 1
      %p45 = por %p43, %p44
      %p47 = scmp.ne.s32.totalorder %s30, %s46
      %p48 = scmp.eq.s32.totalorder %s22, 0
      %p49 = por %p47, %p48
      %s51 = sadd.s32 %s50, 1
      %p54 = scmp.eq.s32.totalorder %s16, 1
      %p55 = scmp.ne.s32.totalorder %s50, %s52
      %p56 = scmp.eq.s32.totalorder %s16, 0
      %p57 = por %p55, %p56
      %p58 = scmp.ne.s32.totalorder %s50, %s52
      %p59 = scmp.eq.s32.totalorder %s21, 1
      %p60 = por %p58, %p59
      %p61 = scmp.ne.s32.totalorder %s52, %s53
      %p62 = scmp.eq.s32.totalorder %s21, 0
      %p63 = por %p61, %p62
      %p64 = scmp.ne.s32.totalorder %s52, %s53
      %p65 = scmp.eq.s32.totalorder %s22, 1
      %p66 = por %p64, %p65
      %p68 = scmp.ne.s32.totalorder %s53, %s67
      %p69 = scmp.eq.s32.totalorder %s22, 0
      %p70 = por %p68, %p69
      %s72 = sadd.s32 %s71, 1
      %p75 = scmp.eq.s32.totalorder %s16, 1
      %p76 = scmp.ne.s32.totalorder %s71, %s73
      %p77 = scmp.eq.s32.totalorder %s16, 0
      %p78 = por %p76, %p77
      %p79 = scmp.ne.s32.totalorder %s71, %s73
      %p80 = scmp.eq.s32.totalorder %s21, 1
      %p81 = por %p79, %p80
      %p82 = scmp.ne.s32.totalorder %s73, %s74
      %p83 = scmp.eq.s32.totalorder %s21, 0
      %p84 = por %p82, %p83
      %p85 = scmp.ne.s32.totalorder %s73, %s74
      %p86 = scmp.eq.s32.totalorder %s22, 1
      %p87 = por %p85, %p86
      %p89 = scmp.ne.s32.totalorder %s74, %s88
      %p90 = scmp.eq.s32.totalorder %s22, 0
      %p91 = por %p89, %p90
      %s93 = sadd.s32 %s92, 1
      %p96 = scmp.eq.s32.totalorder %s16, 1
      %p97 = scmp.ne.s32.totalorder %s92, %s94
      %p98 = scmp.eq.s32.totalorder %s16, 0
      %p99 = por %p97, %p98
      %p100 = scmp.ne.s32.totalorder %s92, %s94
      %p101 = scmp.eq.s32.totalorder %s21, 1
      %p102 = por %p100, %p101
      %p103 = scmp.ne.s32.totalorder %s94, %s95
      %p104 = scmp.eq.s32.totalorder %s21, 0
      %p105 = por %p103, %p104
      %p106 = scmp.ne.s32.totalorder %s94, %s95
      %p107 = scmp.eq.s32.totalorder %s22, 1
      %p108 = por %p106, %p107
      %p110 = scmp.ne.s32.totalorder %s95, %s109
      %p111 = scmp.eq.s32.totalorder %s22, 0
      %p112 = por %p110, %p111
      %s114 = sadd.s32 %s113, 1
      %p117 = scmp.eq.s32.totalorder %s16, 1
      %p118 = scmp.ne.s32.totalorder %s113, %s115
      %p119 = scmp.eq.s32.totalorder %s16, 0
      %p120 = por %p118, %p119
      %p121 = scmp.ne.s32.totalorder %s113, %s115
      %p122 = scmp.eq.s32.totalorder %s21, 1
      %p123 = por %p121, %p122
      %p124 = scmp.ne.s32.totalorder %s115, %s116
      %p125 = scmp.eq.s32.totalorder %s21, 0
      %p126 = por %p124, %p125
      %p127 = scmp.ne.s32.totalorder %s115, %s116
      %p128 = scmp.eq.s32.totalorder %s22, 1
      %p129 = por %p127, %p128
      %p131 = scmp.ne.s32.totalorder %s116, %s130
      %p132 = scmp.eq.s32.totalorder %s22, 0
      %p133 = por %p131, %p132
      %s135 = sadd.s32 %s134, 1
      %p138 = scmp.eq.s32.totalorder %s16, 1
      %p139 = scmp.ne.s32.totalorder %s134, %s136
      %p140 = scmp.eq.s32.totalorder %s16, 0
      %p141 = por %p139, %p140
      %p142 = scmp.ne.s32.totalorder %s134, %s136
      %p143 = scmp.eq.s32.totalorder %s21, 1
      %p144 = por %p142, %p143
      %p145 = scmp.ne.s32.totalorder %s136, %s137
      %p146 = scmp.eq.s32.totalorder %s21, 0
      %p147 = por %p145, %p146
      %p148 = scmp.ne.s32.totalorder %s136, %s137
      %p149 = scmp.eq.s32.totalorder %s22, 1
      %p150 = por %p148, %p149
      %p152 = scmp.ne.s32.totalorder %s137, %s151
      %p153 = scmp.eq.s32.totalorder %s22, 0
      %p154 = por %p152, %p153
      %s156 = sadd.s32 %s155, 1
      %p159 = scmp.eq.s32.totalorder %s16, 1
      %p160 = scmp.ne.s32.totalorder %s155, %s157
      %p161 = scmp.eq.s32.totalorder %s16, 0
      %p162 = por %p160, %p161
      %p163 = scmp.ne.s32.totalorder %s155, %s157
      %p164 = scmp.eq.s32.totalorder %s21, 1
      %p165 = por %p163, %p164
      %p166 = scmp.ne.s32.totalorder %s157, %s158
      %p167 = scmp.eq.s32.totalorder %s21, 0
      %p168 = por %p166, %p167
      %p169 = scmp.ne.s32.totalorder %s157, %s158
      %p170 = scmp.eq.s32.totalorder %s22, 1
      %p171 = por %p169, %p170
      %p173 = scmp.ne.s32.totalorder %s158, %s172
      %p174 = scmp.eq.s32.totalorder %s22, 0
      %p175 = por %p173, %p174
      %s176 = ssub.s32 %s16, %s23
      %p177 = scmp.eq.s32.totalorder %s176, 0
      %s179 = sadd.s32 %s178, 1
      %s180 = scalar_select %p177, %s178, %s179
      %p183 = pneg %p177
      %p184 = scmp.eq.s32.totalorder %s16, 1
      %p185 = por %p183, %p184
      %p186 = scmp.ne.s32.totalorder %s178, %s181
      %p187 = scmp.eq.s32.totalorder %s16, 0
      %p188 = por %p186, %p187
      %p189 = scmp.ne.s32.totalorder %s178, %s181
      %p190 = scmp.eq.s32.totalorder %s21, 1
      %p191 = por %p189, %p190
      %p192 = scmp.ne.s32.totalorder %s181, %s182
      %p193 = scmp.eq.s32.totalorder %s21, 0
      %p194 = por %p192, %p193
      %p195 = scmp.ne.s32.totalorder %s181, %s182
      %p196 = scmp.eq.s32.totalorder %s22, 1
      %p197 = por %p195, %p196
      %p199 = scmp.ne.s32.totalorder %s182, %s198
      %p200 = scmp.eq.s32.totalorder %s22, 0
      %p201 = por %p199, %p200
      %p202 = scmp.le.s32.totalorder 1, %s16
      %p203 = scmp.lt.s32.totalorder %s16, 3
      %p204 = pnand %p202, %p203
      %p205 = pneg %p204
      // Predicated region
      $region9: #{tpu_custom_call.1} parent=5 // pred_check
        _
      $region10: #{tpu_custom_call.1} parent=5 // pred_check_branch
        %207 = sbr.rel (%p204) target = $region12
      $region11: #{tpu_custom_call.1} parent=5 // pred_region
        %s208 = ssub.s32 %s16, 1
        // Predicated region
        $region13: #{tpu_custom_call.1} parent=11 // pred_check
          %p209 = pneg %p63
        $region14: #{tpu_custom_call.1} parent=11 // pred_check_branch
          %211 = sbr.rel (%p209) target = $region16
        $region15: #{tpu_custom_call.1} parent=11 // pred_region
          _
        $region16: #{tpu_custom_call.1} parent=11 // pred_fallthru
          _
        // Predicated region
        $region17: #{tpu_custom_call.1} parent=11 // pred_check
          %p212 = pneg %p84
        $region18: #{tpu_custom_call.1} parent=11 // pred_check_branch
          %214 = sbr.rel (%p212) target = $region20
        $region19: #{tpu_custom_call.1} parent=11 // pred_region
          _
        $region20: #{tpu_custom_call.1} parent=11 // pred_fallthru
          _
        // Predicated region
        $region21: #{tpu_custom_call.1} parent=11 // pred_check
          %p215 = pneg %p105
        $region22: #{tpu_custom_call.1} parent=11 // pred_check_branch
          %217 = sbr.rel (%p215) target = $region24
        $region23: #{tpu_custom_call.1} parent=11 // pred_region
          _
        $region24: #{tpu_custom_call.1} parent=11 // pred_fallthru
          _
        // Predicated region
        $region25: #{tpu_custom_call.1} parent=11 // pred_check
          %p218 = pneg %p126
        $region26: #{tpu_custom_call.1} parent=11 // pred_check_branch
          %220 = sbr.rel (%p218) target = $region28
        $region27: #{tpu_custom_call.1} parent=11 // pred_region
          _
        $region28: #{tpu_custom_call.1} parent=11 // pred_fallthru
          _
        // Predicated region
        $region29: #{tpu_custom_call.1} parent=11 // pred_check
          %p221 = pneg %p147
        $region30: #{tpu_custom_call.1} parent=11 // pred_check_branch
          %223 = sbr.rel (%p221) target = $region32
        $region31: #{tpu_custom_call.1} parent=11 // pred_region
          _
        $region32: #{tpu_custom_call.1} parent=11 // pred_fallthru
          _
        // Predicated region
        $region33: #{tpu_custom_call.1} parent=11 // pred_check
          %p224 = pneg %p168
        $region34: #{tpu_custom_call.1} parent=11 // pred_check_branch
          %226 = sbr.rel (%p224) target = $region36
        $region35: #{tpu_custom_call.1} parent=11 // pred_region
          _
        $region36: #{tpu_custom_call.1} parent=11 // pred_fallthru
          _
      $region12: #{tpu_custom_call.1} parent=5 // pred_fallthru
        _
      %p227 = scmp.lt.s32.totalorder %s16, 2
      // Predicated region
      $region37: #{tpu_custom_call.1} parent=5 // pred_check
        %p228 = pneg %p227
      $region38: #{tpu_custom_call.1} parent=5 // pred_check_branch
        %230 = sbr.rel (%p228) target = $region40
      $region39: #{tpu_custom_call.1} parent=5 // pred_region
        // Predicated region
        $region41: #{tpu_custom_call.1} parent=39 // pred_check
          %p231 = pneg %p36
        $region42: #{tpu_custom_call.1} parent=39 // pred_check_branch
          %233 = sbr.rel (%p231) target = $region44
        $region43: #{tpu_custom_call.1} parent=39 // pred_region
          %p234 = scmp.lt.s32.totalorder %s16, 1
          %s235 = scalar_select %p234, %s16, 1
          %s236 = smul.addr %s235, 16
          %s237 = smul.addr %s236, 8
          %s238 = scalar_lea.vmem %s0, %s237
        $region44: #{tpu_custom_call.1} parent=39 // pred_fallthru
          _
      $region40: #{tpu_custom_call.1} parent=5 // pred_fallthru
        _
      %p239 = scmp.le.s32.totalorder 1, %s16
      %p240 = scmp.lt.s32.totalorder %s16, 3
      %p241 = pnand %p239, %p240
      %p242 = pneg %p241
      // Predicated region
      $region45: #{tpu_custom_call.1} parent=5 // pred_check
        _
      $region46: #{tpu_custom_call.1} parent=5 // pred_check_branch
        %244 = sbr.rel (%p241) target = $region48
      $region47: #{tpu_custom_call.1} parent=5 // pred_region
        %s245 = ssub.s32 %s16, 1
        %p246 = scmp.lt.s32.totalorder %s21, 1
        %s247 = scalar_select %p246, %s21, 1
        %s248 = smul.addr %s247, 16
        %s249 = smul.addr %s248, 8
        %s250 = scalar_lea.vmem %s0, %s249
        %p251 = pneg %p42
        %p252 = pneg %p39
        %p253 = pneg %p63
        %p254 = pneg %p60
        %p255 = pneg %p84
        %p256 = pneg %p81
        %p257 = pneg %p105
        %p258 = pneg %p102
        %p259 = pneg %p126
        %p260 = pneg %p123
        %p261 = pneg %p147
        %p262 = pneg %p144
        %p263 = pneg %p168
        %p264 = pneg %p165
        %p265 = pneg %p194
        %p266 = pneg %p191
        %s267 = sand.u32 %s181, 1
        %s268 = scalar_lea.sflag [#allocation3], %s267
        %s269 = sand.u32 %s181, 1
        %s270 = smul.addr %s269, 128
        %s271 = scalar_lea.vmem [#allocation2], %s270
        %p272 = scmp.lt.s32.totalorder %s21, 1
        %s273 = scalar_select %p272, %s21, 1
        %s274 = smul.addr %s273, 16
        %s275 = smul.addr %s274, 8
        %s276 = scalar_lea.vmem %s0, %s275
        %v278 = vld [vmem:[%s6] sm:$0xff]
        %v279 = vld [vmem:[%s6 + $0x8] sm:$0xff]
        %v280 = vld [vmem:[%s6 + $0x10] sm:$0xff]
        %v281 = vld [vmem:[%s6 + $0x18] sm:$0xff]
        %v282 = vld [vmem:[%s6 + $0x20] sm:$0xff]
        %v283 = vld [vmem:[%s6 + $0x28] sm:$0xff]
        %v284 = vld [vmem:[%s6 + $0x30] sm:$0xff]
        %v285 = vld [vmem:[%s6 + $0x38] sm:$0xff]
        %v286 = vld [vmem:[%s1] sm:$0xff]
        %v287 = vld [vmem:[%s1 + $0x8] sm:$0xff]
        %v288 = vld [vmem:[%s1 + $0x10] sm:$0xff]
        %v289 = vld [vmem:[%s1 + $0x18] sm:$0xff]
        %v290 = vld [vmem:[%s1 + $0x20] sm:$0xff]
        %v291 = vld [vmem:[%s1 + $0x28] sm:$0xff]
        %v292 = vld [vmem:[%s1 + $0x30] sm:$0xff]
        %v293 = vld [vmem:[%s1 + $0x38] sm:$0xff]
        %v294 = vld [vmem:[%s2] sm:$0xff]
        %v295 = vld [vmem:[%s2 + $0x8] sm:$0xff]
        %v296 = vld [vmem:[%s2 + $0x10] sm:$0xff]
        %v297 = vld [vmem:[%s2 + $0x18] sm:$0xff]
        %v298 = vld [vmem:[%s2 + $0x20] sm:$0xff]
        %v299 = vld [vmem:[%s2 + $0x28] sm:$0xff]
        %v300 = vld [vmem:[%s2 + $0x30] sm:$0xff]
        %v301 = vld [vmem:[%s2 + $0x38] sm:$0xff]
        %v302 = vld [vmem:[%s3] sm:$0xf]
        %v303 = vld [vmem:[%s3 + $0x4] sm:$0xf]
        %v304 = vld [vmem:[%s3 + $0x8] sm:$0xf]
        %v305 = vld [vmem:[%s3 + $0xc] sm:$0xf]
        %v306 = vld [vmem:[%s3 + $0x10] sm:$0xf]
        %v307 = vld [vmem:[%s3 + $0x14] sm:$0xf]
        %v308 = vld [vmem:[%s3 + $0x18] sm:$0xf]
        %v309 = vld [vmem:[%s3 + $0x1c] sm:$0xf]
        %v310 = vld [vmem:[%s3 + $0x20] sm:$0xf]
        %v311 = vld [vmem:[%s3 + $0x24] sm:$0xf]
        %v312 = vld [vmem:[%s3 + $0x28] sm:$0xf]
        %v313 = vld [vmem:[%s3 + $0x2c] sm:$0xf]
        %v314 = vld [vmem:[%s3 + $0x30] sm:$0xf]
        %v315 = vld [vmem:[%s3 + $0x34] sm:$0xf]
        %v316 = vld [vmem:[%s3 + $0x38] sm:$0xf]
        %v317 = vld [vmem:[%s3 + $0x3c] sm:$0xf]
        %v318 = vld [vmem:[%s3 + $0x40] sm:$0xf]
        %v319 = vld [vmem:[%s3 + $0x44] sm:$0xf]
        %v320 = vld [vmem:[%s3 + $0x48] sm:$0xf]
        %v321 = vld [vmem:[%s3 + $0x4c] sm:$0xf]
        %v322 = vld [vmem:[%s3 + $0x50] sm:$0xf]
        %v323 = vld [vmem:[%s3 + $0x54] sm:$0xf]
        %v324 = vld [vmem:[%s3 + $0x58] sm:$0xf]
        %v325 = vld [vmem:[%s3 + $0x5c] sm:$0xf]
        %v326 = vld [vmem:[%s4] sm:$0xff]
        %v327 = vld [vmem:[%s4 + $0x8] sm:$0xff]
        %v328 = vld [vmem:[%s4 + $0x10] sm:$0xff]
        %v329 = vld [vmem:[%s4 + $0x18] sm:$0xff]
        %v330 = vld [vmem:[%s4 + $0x20] sm:$0xff]
        %v331 = vld [vmem:[%s4 + $0x28] sm:$0xff]
        %v332 = vld [vmem:[%s4 + $0x30] sm:$0xff]
        %v333 = vld [vmem:[%s4 + $0x38] sm:$0xff]
        %v334 = vld [vmem:[%s4 + $0x40] sm:$0xff]
        %v335 = vld [vmem:[%s4 + $0x48] sm:$0xff]
        %v336 = vld [vmem:[%s4 + $0x50] sm:$0xff]
        %v337 = vld [vmem:[%s4 + $0x58] sm:$0xff]
        %v338 = vld [vmem:[%s4 + $0x60] sm:$0xff]
        %v339 = vld [vmem:[%s4 + $0x68] sm:$0xff]
        %v340 = vld [vmem:[%s4 + $0x70] sm:$0xff]
        %v341 = vld [vmem:[%s4 + $0x78] sm:$0xff]
        %v342 = vld [vmem:[%s4 + $0x80] sm:$0xff]
        %v343 = vld [vmem:[%s4 + $0x88] sm:$0xff]
        %v344 = vld [vmem:[%s4 + $0x90] sm:$0xff]
        %v345 = vld [vmem:[%s4 + $0x98] sm:$0xff]
        %v346 = vld [vmem:[%s4 + $0xa0] sm:$0xff]
        %v347 = vld [vmem:[%s4 + $0xa8] sm:$0xff]
        %v348 = vld [vmem:[%s4 + $0xb0] sm:$0xff]
        %v349 = vld [vmem:[%s4 + $0xb8] sm:$0xff]
        %v350 = vld [vmem:[%s5] sm:$0xf]
        %v351 = vld [vmem:[%s5 + $0x4] sm:$0xf]
        %v352 = vld [vmem:[%s5 + $0x8] sm:$0xf]
        %v353 = vld [vmem:[%s5 + $0xc] sm:$0xf]
        %v354 = vld [vmem:[%s5 + $0x10] sm:$0xf]
        %v355 = vld [vmem:[%s5 + $0x14] sm:$0xf]
        %v356 = vld [vmem:[%s5 + $0x18] sm:$0xf]
        %v357 = vld [vmem:[%s5 + $0x1c] sm:$0xf]
        %v358 = vld [vmem:[%s276] sm:$0xff]
        %v359 = vld [vmem:[%s276 + $0x8] sm:$0xff]
        %v360 = vld [vmem:[%s276 + $0x10] sm:$0xff]
        %v361 = vld [vmem:[%s276 + $0x18] sm:$0xff]
        %v362 = vld [vmem:[%s276 + $0x20] sm:$0xff]
        %v363 = vld [vmem:[%s276 + $0x28] sm:$0xff]
        %v364 = vld [vmem:[%s276 + $0x30] sm:$0xff]
        %v365 = vld [vmem:[%s276 + $0x38] sm:$0xff]
        %v366 = vld [vmem:[%s276 + $0x40] sm:$0xff]
        %v367 = vld [vmem:[%s276 + $0x48] sm:$0xff]
        %v368 = vld [vmem:[%s276 + $0x50] sm:$0xff]
        %v369 = vld [vmem:[%s276 + $0x58] sm:$0xff]
        %v370 = vld [vmem:[%s276 + $0x60] sm:$0xff]
        %v371 = vld [vmem:[%s276 + $0x68] sm:$0xff]
        %v372 = vld [vmem:[%s276 + $0x70] sm:$0xff]
        %v373 = vld [vmem:[%s276 + $0x78] sm:$0xff]
        %v374 = vadd.f32 %v358, %v359
        %375 = vadd.xlane.f32.xlu0 %v374
        %v376 = vpop.xlane.xlu0 %375
        %v377 = vadd.f32 %v360, %v361
        %378 = vadd.xlane.f32.xlu0 %v377
        %v379 = vpop.xlane.xlu0 %378
        %v380 = vadd.f32 %v362, %v363
        %381 = vadd.xlane.f32.xlu0 %v380
        %v382 = vpop.xlane.xlu0 %381
        %v383 = vadd.f32 %v364, %v365
        %384 = vadd.xlane.f32.xlu0 %v383
        %v385 = vpop.xlane.xlu0 %384
        %v386 = vadd.f32 %v366, %v367
        %387 = vadd.xlane.f32.xlu0 %v386
        %v388 = vpop.xlane.xlu0 %387
        %v389 = vadd.f32 %v368, %v369
        %390 = vadd.xlane.f32.xlu0 %v389
        %v391 = vpop.xlane.xlu0 %390
        %v392 = vadd.f32 %v370, %v371
        %393 = vadd.xlane.f32.xlu0 %v392
        %v394 = vpop.xlane.xlu0 %393
        %v395 = vadd.f32 %v372, %v373
        %396 = vadd.xlane.f32.xlu0 %v395
        %v397 = vpop.xlane.xlu0 %396
        %vm398 = vcmask 523264
        %v400 = vsel %vm398, %v286, 0
        %v403 = vsel %vm398, %v287, 0
        %v406 = vsel %vm398, %v288, 0
        %v409 = vsel %vm398, %v289, 0
        %v412 = vsel %vm398, %v290, 0
        %v415 = vsel %vm398, %v291, 0
        %v418 = vsel %vm398, %v292, 0
        %v421 = vsel %vm398, %v293, 0
        %423 = vmatprep.subr.mxu0 0.0
        %424 = vmatpush1.msra.mxu0 %v376
        %425 = vmatprep.subr.mxu0 0.0
        %426 = vmatpush1.msra.mxu0 %v379
        %427 = vmatprep.subr.mxu0 0.0
        %428 = vmatpush1.msra.mxu0 %v382
        %429 = vmatprep.subr.mxu0 0.0
        %430 = vmatpush1.msra.mxu0 %v385
        %431 = vmatprep.subr.mxu0 0.0
        %432 = vmatpush1.msra.mxu0 %v388
        %433 = vmatprep.subr.mxu0 0.0
        %434 = vmatpush1.msra.mxu0 %v391
        %435 = vmatprep.subr.mxu0 0.0
        %436 = vmatpush1.msra.mxu0 %v394
        %437 = vmatprep.subr.mxu0 0.0
        %438 = vmatpush1.msra.mxu0 %v397
        %439 = vmatprep.subr.mxu0 0.0
        %440 = vmatpush1.msra.mxu0 0.0
        %441 = vmatprep.subr.mxu0 0.0
        %442 = vmatpush1.msra.mxu0 0.0
        %443 = vmatprep.subr.mxu0 0.0
        %444 = vmatpush1.msra.mxu0 0.0
        %445 = vmatprep.subr.mxu0 0.0
        %446 = vmatpush1.msra.mxu0 0.0
        %447 = vmatprep.subr.mxu0 0.0
        %448 = vmatpush1.msra.mxu0 0.0
        %449 = vmatprep.subr.mxu0 0.0
        %450 = vmatpush1.msra.mxu0 0.0
        %451 = vmatprep.subr.mxu0 0.0
        %452 = vmatpush1.msra.mxu0 0.0
        %453 = vmatprep.subr.mxu0 0.0
        %454 = vmatpush1.msra.mxu0 0.0
        %455 = vmatprep.subr.mxu0 0.0
        %456 = vmatpush1.msra.mxu0 0.0
        %457 = vmatprep.subr.mxu0 0.0
        %458 = vmatpush1.msra.mxu0 0.0
        %459 = vmatprep.subr.mxu0 0.0
        %460 = vmatpush1.msra.mxu0 0.0
        %461 = vmatprep.subr.mxu0 0.0
        %462 = vmatpush1.msra.mxu0 0.0
        %463 = vmatprep.subr.mxu0 0.0
        %464 = vmatpush1.msra.mxu0 0.0
        %465 = vmatprep.subr.mxu0 0.0
        %466 = vmatpush1.msra.mxu0 0.0
        %467 = vmatprep.subr.mxu0 0.0
        %468 = vmatpush1.msra.mxu0 0.0
        %469 = vmatprep.subr.mxu0 0.0
        %470 = vmatpush1.msra.mxu0 0.0
        %471 = vmatprep.subr.mxu0 0.0
        %472 = vmatpush1.msra.mxu0 0.0
        %473 = vmatprep.subr.mxu0 0.0
        %474 = vmatpush1.msra.mxu0 0.0
        %475 = vmatprep.subr.mxu0 0.0
        %476 = vmatpush1.msra.mxu0 0.0
        %477 = vmatprep.subr.mxu0 0.0
        %478 = vmatpush1.msra.mxu0 0.0
        %479 = vmatprep.subr.mxu0 0.0
        %480 = vmatpush1.msra.mxu0 0.0
        %481 = vmatprep.subr.mxu0 0.0
        %482 = vmatpush1.msra.mxu0 0.0
        %483 = vmatprep.subr.mxu0 0.0
        %484 = vmatpush1.msra.mxu0 0.0
        %485 = vmatprep.subr.mxu0 0.0
        %486 = vmatpush1.msra.mxu0 0.0
        %487 = vmatprep.mubr.f32.mxu0 0.0
        %488 = vmatmul.mubr.f32.gmra.mrb[0].mxu0 %v400
        %v489 = vpop.f32.mrb[0].mxu0
        %v490 = vadd.f32 0.0, %v489
        %v491 = vpop.f32.mrb[0].mxu0
        %492 = vmatprep.mubr.f32.mxu0 0.0
        %493 = vmatmul.mubr.f32.gmra.mrb[0].mxu0 %v403
        %v494 = vpop.f32.mrb[0].mxu0
        %v495 = vadd.f32 0.0, %v494
        %v496 = vpop.f32.mrb[0].mxu0
        %497 = vmatprep.mubr.f32.mxu0 0.0
        %498 = vmatmul.mubr.f32.gmra.mrb[0].mxu0 %v406
        %v499 = vpop.f32.mrb[0].mxu0
        %v500 = vadd.f32 0.0, %v499
        %v501 = vpop.f32.mrb[0].mxu0
        %502 = vmatprep.mubr.f32.mxu0 0.0
        %503 = vmatmul.mubr.f32.gmra.mrb[0].mxu0 %v409
        %v504 = vpop.f32.mrb[0].mxu0
        %v505 = vadd.f32 0.0, %v504
        %v506 = vpop.f32.mrb[0].mxu0
        %507 = vmatprep.mubr.f32.mxu0 0.0
        %508 = vmatmul.mubr.f32.gmra.mrb[0].mxu0 %v412
        %v509 = vpop.f32.mrb[0].mxu0
        %v510 = vadd.f32 0.0, %v509
        %v511 = vpop.f32.mrb[0].mxu0
        %512 = vmatprep.mubr.f32.mxu0 0.0
        %513 = vmatmul.mubr.f32.gmra.mrb[0].mxu0 %v415
        %v514 = vpop.f32.mrb[0].mxu0
        %v515 = vadd.f32 0.0, %v514
        %v516 = vpop.f32.mrb[0].mxu0
        %517 = vmatprep.mubr.f32.mxu0 0.0
        %518 = vmatmul.mubr.f32.gmra.mrb[0].mxu0 %v418
        %v519 = vpop.f32.mrb[0].mxu0
        %v520 = vadd.f32 0.0, %v519
        %v521 = vpop.f32.mrb[0].mxu0
        %522 = vmatprep.mubr.f32.mxu0 0.0
        %523 = vmatmul.mubr.f32.gmra.mrb[0].mxu0 %v421
        %v524 = vpop.f32.mrb[0].mxu0
        %v525 = vadd.f32 0.0, %v524
        %v526 = vpop.f32.mrb[0].mxu0
        %527 = vdwg.mxu0
        %529 = vset.pattern.permute.xlu0 0
        %530 = vperm.xlu0 %529, %v490
        %v531 = vpop.permute.xlu0 %530
        %534 = vset.pattern.permute.xlu0 0
        %535 = vperm.xlu0 %534, %v495
        %v536 = vpop.permute.xlu0 %535
        %539 = vset.pattern.permute.xlu0 0
        %540 = vperm.xlu0 %539, %v500
        %v541 = vpop.permute.xlu0 %540
        %544 = vset.pattern.permute.xlu0 0
        %545 = vperm.xlu0 %544, %v505
        %v546 = vpop.permute.xlu0 %545
        %549 = vset.pattern.permute.xlu0 0
        %550 = vperm.xlu0 %549, %v510
        %v551 = vpop.permute.xlu0 %550
        %554 = vset.pattern.permute.xlu0 0
        %555 = vperm.xlu0 %554, %v515
        %v556 = vpop.permute.xlu0 %555
        %559 = vset.pattern.permute.xlu0 0
        %560 = vperm.xlu0 %559, %v520
        %v561 = vpop.permute.xlu0 %560
        %564 = vset.pattern.permute.xlu0 0
        %565 = vperm.xlu0 %564, %v525
        %v566 = vpop.permute.xlu0 %565
        %v568 = vsub.f32 %v358, %v531
        %v569 = vsub.f32 %v359, %v531
        %v570 = vsub.f32 %v360, %v536
        %v571 = vsub.f32 %v361, %v536
        %v572 = vsub.f32 %v362, %v541
        %v573 = vsub.f32 %v363, %v541
        %v574 = vsub.f32 %v364, %v546
        %v575 = vsub.f32 %v365, %v546
        %v576 = vsub.f32 %v366, %v551
        %v577 = vsub.f32 %v367, %v551
        %v578 = vsub.f32 %v368, %v556
        %v579 = vsub.f32 %v369, %v556
        %v580 = vsub.f32 %v370, %v561
        %v581 = vsub.f32 %v371, %v561
        %v582 = vsub.f32 %v372, %v566
        %v583 = vsub.f32 %v373, %v566
        %v584 = vmul.f32 %v568, %v568
        %v585 = vmul.f32 %v569, %v569
        %v586 = vmul.f32 %v570, %v570
        %v587 = vmul.f32 %v571, %v571
        %v588 = vmul.f32 %v572, %v572
        %v589 = vmul.f32 %v573, %v573
        %v590 = vmul.f32 %v574, %v574
        %v591 = vmul.f32 %v575, %v575
        %v592 = vmul.f32 %v576, %v576
        %v593 = vmul.f32 %v577, %v577
        %v594 = vmul.f32 %v578, %v578
        %v595 = vmul.f32 %v579, %v579
        %v596 = vmul.f32 %v580, %v580
        %v597 = vmul.f32 %v581, %v581
        %v598 = vmul.f32 %v582, %v582
        %v599 = vmul.f32 %v583, %v583
        %v600 = vadd.f32 %v584, %v585
        %601 = vadd.xlane.f32.xlu0 %v600
        %v602 = vpop.xlane.xlu0 %601
        %v603 = vadd.f32 %v586, %v587
        %604 = vadd.xlane.f32.xlu0 %v603
        %v605 = vpop.xlane.xlu0 %604
        %v606 = vadd.f32 %v588, %v589
        %607 = vadd.xlane.f32.xlu0 %v606
        %v608 = vpop.xlane.xlu0 %607
        %v609 = vadd.f32 %v590, %v591
        %610 = vadd.xlane.f32.xlu0 %v609
        %v611 = vpop.xlane.xlu0 %610
        %v612 = vadd.f32 %v592, %v593
        %613 = vadd.xlane.f32.xlu0 %v612
        %v614 = vpop.xlane.xlu0 %613
        %v615 = vadd.f32 %v594, %v595
        %616 = vadd.xlane.f32.xlu0 %v615
        %v617 = vpop.xlane.xlu0 %616
        %v618 = vadd.f32 %v596, %v597
        %619 = vadd.xlane.f32.xlu0 %v618
        %v620 = vpop.xlane.xlu0 %619
        %v621 = vadd.f32 %v598, %v599
        %622 = vadd.xlane.f32.xlu0 %v621
        %v623 = vpop.xlane.xlu0 %622
        %624 = vmatprep.subr.mxu0 0.0
        %625 = vmatpush1.msra.mxu0 %v602
        %626 = vmatprep.subr.mxu0 0.0
        %627 = vmatpush1.msra.mxu0 %v605
        %628 = vmatprep.subr.mxu0 0.0
        %629 = vmatpush1.msra.mxu0 %v608
        %630 = vmatprep.subr.mxu0 0.0
        %631 = vmatpush1.msra.mxu0 %v611
        %632 = vmatprep.subr.mxu0 0.0
        %633 = vmatpush1.msra.mxu0 %v614
        %634 = vmatprep.subr.mxu0 0.0
        %635 = vmatpush1.msra.mxu0 %v617
        %636 = vmatprep.subr.mxu0 0.0
        %637 = vmatpush1.msra.mxu0 %v620
        %638 = vmatprep.subr.mxu0 0.0
        %639 = vmatpush1.msra.mxu0 %v623
        %640 = vmatprep.subr.mxu0 0.0
        %641 = vmatpush1.msra.mxu0 0.0
        %642 = vmatprep.subr.mxu0 0.0
        %643 = vmatpush1.msra.mxu0 0.0
        %644 = vmatprep.subr.mxu0 0.0
        %645 = vmatpush1.msra.mxu0 0.0
        %646 = vmatprep.subr.mxu0 0.0
        %647 = vmatpush1.msra.mxu0 0.0
        %648 = vmatprep.subr.mxu0 0.0
        %649 = vmatpush1.msra.mxu0 0.0
        %650 = vmatprep.subr.mxu0 0.0
        %651 = vmatpush1.msra.mxu0 0.0
        %652 = vmatprep.subr.mxu0 0.0
        %653 = vmatpush1.msra.mxu0 0.0
        %654 = vmatprep.subr.mxu0 0.0
        %655 = vmatpush1.msra.mxu0 0.0
        %656 = vmatprep.subr.mxu0 0.0
        %657 = vmatpush1.msra.mxu0 0.0
        %658 = vmatprep.subr.mxu0 0.0
        %659 = vmatpush1.msra.mxu0 0.0
        %660 = vmatprep.subr.mxu0 0.0
        %661 = vmatpush1.msra.mxu0 0.0
        %662 = vmatprep.subr.mxu0 0.0
        %663 = vmatpush1.msra.mxu0 0.0
        %664 = vmatprep.subr.mxu0 0.0
        %665 = vmatpush1.msra.mxu0 0.0
        %666 = vmatprep.subr.mxu0 0.0
        %667 = vmatpush1.msra.mxu0 0.0
        %668 = vmatprep.subr.mxu0 0.0
        %669 = vmatpush1.msra.mxu0 0.0
        %670 = vmatprep.subr.mxu0 0.0
        %671 = vmatpush1.msra.mxu0 0.0
        %672 = vmatprep.subr.mxu0 0.0
        %673 = vmatpush1.msra.mxu0 0.0
        %674 = vmatprep.subr.mxu0 0.0
        %675 = vmatpush1.msra.mxu0 0.0
        %676 = vmatprep.subr.mxu0 0.0
        %677 = vmatpush1.msra.mxu0 0.0
        %678 = vmatprep.subr.mxu0 0.0
        %679 = vmatpush1.msra.mxu0 0.0
        %680 = vmatprep.subr.mxu0 0.0
        %681 = vmatpush1.msra.mxu0 0.0
        %682 = vmatprep.subr.mxu0 0.0
        %683 = vmatpush1.msra.mxu0 0.0
        %684 = vmatprep.subr.mxu0 0.0
        %685 = vmatpush1.msra.mxu0 0.0
        %686 = vmatprep.subr.mxu0 0.0
        %687 = vmatpush1.msra.mxu0 0.0
        %688 = vmatprep.mubr.f32.mxu0 0.0
        %689 = vmatmul.mubr.f32.gmra.mrb[0].mxu0 %v400
        %v690 = vpop.f32.mrb[0].mxu0
        %v691 = vadd.f32 1e-06, %v690
        %v692 = vpop.f32.mrb[0].mxu0
        %693 = vmatprep.mubr.f32.mxu0 0.0
        %694 = vmatmul.mubr.f32.gmra.mrb[0].mxu0 %v403
        %v695 = vpop.f32.mrb[0].mxu0
        %v696 = vadd.f32 1e-06, %v695
        %v697 = vpop.f32.mrb[0].mxu0
        %698 = vmatprep.mubr.f32.mxu0 0.0
        %699 = vmatmul.mubr.f32.gmra.mrb[0].mxu0 %v406
        %v700 = vpop.f32.mrb[0].mxu0
        %v701 = vadd.f32 1e-06, %v700
        %v702 = vpop.f32.mrb[0].mxu0
        %703 = vmatprep.mubr.f32.mxu0 0.0
        %704 = vmatmul.mubr.f32.gmra.mrb[0].mxu0 %v409
        %v705 = vpop.f32.mrb[0].mxu0
        %v706 = vadd.f32 1e-06, %v705
        %v707 = vpop.f32.mrb[0].mxu0
        %708 = vmatprep.mubr.f32.mxu0 0.0
        %709 = vmatmul.mubr.f32.gmra.mrb[0].mxu0 %v412
        %v710 = vpop.f32.mrb[0].mxu0
        %v711 = vadd.f32 1e-06, %v710
        %v712 = vpop.f32.mrb[0].mxu0
        %713 = vmatprep.mubr.f32.mxu0 0.0
        %714 = vmatmul.mubr.f32.gmra.mrb[0].mxu0 %v415
        %v715 = vpop.f32.mrb[0].mxu0
        %v716 = vadd.f32 1e-06, %v715
        %v717 = vpop.f32.mrb[0].mxu0
        %718 = vmatprep.mubr.f32.mxu0 0.0
        %719 = vmatmul.mubr.f32.gmra.mrb[0].mxu0 %v418
        %v720 = vpop.f32.mrb[0].mxu0
        %v721 = vadd.f32 1e-06, %v720
        %v722 = vpop.f32.mrb[0].mxu0
        %723 = vmatprep.mubr.f32.mxu0 0.0
        %724 = vmatmul.mubr.f32.gmra.mrb[0].mxu0 %v421
        %v725 = vpop.f32.mrb[0].mxu0
        %v726 = vadd.f32 1e-06, %v725
        %v727 = vpop.f32.mrb[0].mxu0
        %728 = vdwg.mxu0
        %v729 = vrsqrt.pop %v691
        %v730 = vrsqrt.pop %v696
        %v731 = vrsqrt.pop %v701
        %v732 = vrsqrt.pop %v706
        %v733 = vrsqrt.pop %v711
        %v734 = vrsqrt.pop %v716
        %v735 = vrsqrt.pop %v721
        %v736 = vrsqrt.pop %v726
        %738 = vset.pattern.permute.xlu0 0
        %739 = vperm.xlu0 %738, %v729
        %v740 = vpop.permute.xlu0 %739
        %743 = vset.pattern.permute.xlu0 0
        %744 = vperm.xlu0 %743, %v730
        %v745 = vpop.permute.xlu0 %744
        %748 = vset.pattern.permute.xlu0 0
        %749 = vperm.xlu0 %748, %v731
        %v750 = vpop.permute.xlu0 %749
        %753 = vset.pattern.permute.xlu0 0
        %754 = vperm.xlu0 %753, %v732
        %v755 = vpop.permute.xlu0 %754
        %758 = vset.pattern.permute.xlu0 0
        %759 = vperm.xlu0 %758, %v733
        %v760 = vpop.permute.xlu0 %759
        %763 = vset.pattern.permute.xlu0 0
        %764 = vperm.xlu0 %763, %v734
        %v765 = vpop.permute.xlu0 %764
        %768 = vset.pattern.permute.xlu0 0
        %769 = vperm.xlu0 %768, %v735
        %v770 = vpop.permute.xlu0 %769
        %773 = vset.pattern.permute.xlu0 0
        %774 = vperm.xlu0 %773, %v736
        %v775 = vpop.permute.xlu0 %774
        %v777 = vmul.f32 %v568, %v740
        %v778 = vmul.f32 %v569, %v740
        %v779 = vmul.f32 %v570, %v745
        %v780 = vmul.f32 %v571, %v745
        %v781 = vmul.f32 %v572, %v750
        %v782 = vmul.f32 %v573, %v750
        %v783 = vmul.f32 %v574, %v755
        %v784 = vmul.f32 %v575, %v755
        %v785 = vmul.f32 %v576, %v760
        %v786 = vmul.f32 %v577, %v760
        %v787 = vmul.f32 %v578, %v765
        %v788 = vmul.f32 %v579, %v765
        %v789 = vmul.f32 %v580, %v770
        %v790 = vmul.f32 %v581, %v770
        %v791 = vmul.f32 %v582, %v775
        %v792 = vmul.f32 %v583, %v775
        %794 = vset.pattern.permute.xlu0 0
        %795 = vperm.xlu0 %794, %v294
        %v796 = vpop.permute.xlu0 %795
        %799 = vset.pattern.permute.xlu0 0
        %800 = vperm.xlu0 %799, %v295
        %v801 = vpop.permute.xlu0 %800
        %804 = vset.pattern.permute.xlu0 0
        %805 = vperm.xlu0 %804, %v296
        %v806 = vpop.permute.xlu0 %805
        %809 = vset.pattern.permute.xlu0 0
        %810 = vperm.xlu0 %809, %v297
        %v811 = vpop.permute.xlu0 %810
        %814 = vset.pattern.permute.xlu0 0
        %815 = vperm.xlu0 %814, %v298
        %v816 = vpop.permute.xlu0 %815
        %819 = vset.pattern.permute.xlu0 0
        %820 = vperm.xlu0 %819, %v299
        %v821 = vpop.permute.xlu0 %820
        %824 = vset.pattern.permute.xlu0 0
        %825 = vperm.xlu0 %824, %v300
        %v826 = vpop.permute.xlu0 %825
        %829 = vset.pattern.permute.xlu0 0
        %830 = vperm.xlu0 %829, %v301
        %v831 = vpop.permute.xlu0 %830
        %v833 = vmul.f32 %v777, %v796
        %v834 = vmul.f32 %v778, %v796
        %v835 = vmul.f32 %v779, %v801
        %v836 = vmul.f32 %v780, %v801
        %v837 = vmul.f32 %v781, %v806
        %v838 = vmul.f32 %v782, %v806
        %v839 = vmul.f32 %v783, %v811
        %v840 = vmul.f32 %v784, %v811
        %v841 = vmul.f32 %v785, %v816
        %v842 = vmul.f32 %v786, %v816
        %v843 = vmul.f32 %v787, %v821
        %v844 = vmul.f32 %v788, %v821
        %v845 = vmul.f32 %v789, %v826
        %v846 = vmul.f32 %v790, %v826
        %v847 = vmul.f32 %v791, %v831
        %v848 = vmul.f32 %v792, %v831
        %849 = vset.pattern.permute.xlu0 1
        %850 = vperm.xlu0 %849, %v294
        %v851 = vpop.permute.xlu0 %850
        %853 = vset.pattern.permute.xlu0 1
        %854 = vperm.xlu0 %853, %v295
        %v855 = vpop.permute.xlu0 %854
        %857 = vset.pattern.permute.xlu0 1
        %858 = vperm.xlu0 %857, %v296
        %v859 = vpop.permute.xlu0 %858
        %861 = vset.pattern.permute.xlu0 1
        %862 = vperm.xlu0 %861, %v297
        %v863 = vpop.permute.xlu0 %862
        %865 = vset.pattern.permute.xlu0 1
        %866 = vperm.xlu0 %865, %v298
        %v867 = vpop.permute.xlu0 %866
        %869 = vset.pattern.permute.xlu0 1
        %870 = vperm.xlu0 %869, %v299
        %v871 = vpop.permute.xlu0 %870
        %873 = vset.pattern.permute.xlu0 1
        %874 = vperm.xlu0 %873, %v300
        %v875 = vpop.permute.xlu0 %874
        %877 = vset.pattern.permute.xlu0 1
        %878 = vperm.xlu0 %877, %v301
        %v879 = vpop.permute.xlu0 %878
        %v881 = vadd.f32 %v833, %v851
        %v882 = vadd.f32 %v834, %v851
        %v883 = vadd.f32 %v835, %v855
        %v884 = vadd.f32 %v836, %v855
        %v885 = vadd.f32 %v837, %v859
        %v886 = vadd.f32 %v838, %v859
        %v887 = vadd.f32 %v839, %v863
        %v888 = vadd.f32 %v840, %v863
        %v889 = vadd.f32 %v841, %v867
        %v890 = vadd.f32 %v842, %v867
        %v891 = vadd.f32 %v843, %v871
        %v892 = vadd.f32 %v844, %v871
        %v893 = vadd.f32 %v845, %v875
        %v894 = vadd.f32 %v846, %v875
        %v895 = vadd.f32 %v847, %v879
        %v896 = vadd.f32 %v848, %v879
        %v897 = vpack.c.bf16 %v883, %v881
        %v898 = vpack.c.bf16 %v884, %v882
        %v899 = vpack.c.bf16 %v887, %v885
        %v900 = vpack.c.bf16 %v888, %v886
        %v901 = vpack.c.bf16 %v891, %v889
        %v902 = vpack.c.bf16 %v892, %v890
        %v903 = vpack.c.bf16 %v895, %v893
        %v904 = vpack.c.bf16 %v896, %v894
        %906 = vset.pattern.permute.xlu0 0
        %907 = vperm.xlu0 %906, %v326
        %v908 = vpop.permute.xlu0 %907
        %911 = vset.pattern.permute.xlu0 0
        %912 = vperm.xlu0 %911, %v327
        %v913 = vpop.permute.xlu0 %912
        %916 = vset.pattern.permute.xlu0 0
        %917 = vperm.xlu0 %916, %v328
        %v918 = vpop.permute.xlu0 %917
        %921 = vset.pattern.permute.xlu0 0
        %922 = vperm.xlu0 %921, %v329
        %v923 = vpop.permute.xlu0 %922
        %926 = vset.pattern.permute.xlu0 0
        %927 = vperm.xlu0 %926, %v330
        %v928 = vpop.permute.xlu0 %927
        %931 = vset.pattern.permute.xlu0 0
        %932 = vperm.xlu0 %931, %v331
        %v933 = vpop.permute.xlu0 %932
        %936 = vset.pattern.permute.xlu0 0
        %937 = vperm.xlu0 %936, %v332
        %v938 = vpop.permute.xlu0 %937
        %941 = vset.pattern.permute.xlu0 0
        %942 = vperm.xlu0 %941, %v333
        %v943 = vpop.permute.xlu0 %942
        %946 = vset.pattern.permute.xlu0 0
        %947 = vperm.xlu0 %946, %v334
        %v948 = vpop.permute.xlu0 %947
        %951 = vset.pattern.permute.xlu0 0
        %952 = vperm.xlu0 %951, %v335
        %v953 = vpop.permute.xlu0 %952
        %956 = vset.pattern.permute.xlu0 0
        %957 = vperm.xlu0 %956, %v336
        %v958 = vpop.permute.xlu0 %957
        %961 = vset.pattern.permute.xlu0 0
        %962 = vperm.xlu0 %961, %v337
        %v963 = vpop.permute.xlu0 %962
        %966 = vset.pattern.permute.xlu0 0
        %967 = vperm.xlu0 %966, %v338
        %v968 = vpop.permute.xlu0 %967
        %971 = vset.pattern.permute.xlu0 0
        %972 = vperm.xlu0 %971, %v339
        %v973 = vpop.permute.xlu0 %972
        %976 = vset.pattern.permute.xlu0 0
        %977 = vperm.xlu0 %976, %v340
        %v978 = vpop.permute.xlu0 %977
        %981 = vset.pattern.permute.xlu0 0
        %982 = vperm.xlu0 %981, %v341
        %v983 = vpop.permute.xlu0 %982
        %986 = vset.pattern.permute.xlu0 0
        %987 = vperm.xlu0 %986, %v342
        %v988 = vpop.permute.xlu0 %987
        %991 = vset.pattern.permute.xlu0 0
        %992 = vperm.xlu0 %991, %v343
        %v993 = vpop.permute.xlu0 %992
        %996 = vset.pattern.permute.xlu0 0
        %997 = vperm.xlu0 %996, %v344
        %v998 = vpop.permute.xlu0 %997
        %1001 = vset.pattern.permute.xlu0 0
        %1002 = vperm.xlu0 %1001, %v345
        %v1003 = vpop.permute.xlu0 %1002
        %1006 = vset.pattern.permute.xlu0 0
        %1007 = vperm.xlu0 %1006, %v346
        %v1008 = vpop.permute.xlu0 %1007
        %1011 = vset.pattern.permute.xlu0 0
        %1012 = vperm.xlu0 %1011, %v347
        %v1013 = vpop.permute.xlu0 %1012
        %1016 = vset.pattern.permute.xlu0 0
        %1017 = vperm.xlu0 %1016, %v348
        %v1018 = vpop.permute.xlu0 %1017
        %1021 = vset.pattern.permute.xlu0 0
        %1022 = vperm.xlu0 %1021, %v349
        %v1023 = vpop.permute.xlu0 %1022
        %v1049 = vunpack.c.l.b16 %v302
        %v1050 = vunpack.c.l.b16 %v303
        %v1051 = vunpack.c.l.b16 %v304
        %v1052 = vunpack.c.l.b16 %v305
        %v1053 = vunpack.c.l.b16 %v306
        %v1054 = vunpack.c.l.b16 %v307
        %v1055 = vunpack.c.l.b16 %v308
        %v1056 = vunpack.c.l.b16 %v309
        %v1057 = vunpack.c.l.b16 %v310
        %v1058 = vunpack.c.l.b16 %v311
        %v1059 = vunpack.c.l.b16 %v312
        %v1060 = vunpack.c.l.b16 %v313
        %v1061 = vunpack.c.l.b16 %v314
        %v1062 = vunpack.c.l.b16 %v315
        %v1063 = vunpack.c.l.b16 %v316
        %v1064 = vunpack.c.l.b16 %v317
        %v1065 = vunpack.c.l.b16 %v318
        %v1066 = vunpack.c.l.b16 %v319
        %v1067 = vunpack.c.l.b16 %v320
        %v1068 = vunpack.c.l.b16 %v321
        %v1069 = vunpack.c.l.b16 %v322
        %v1070 = vunpack.c.l.b16 %v323
        %v1071 = vunpack.c.l.b16 %v324
        %v1072 = vunpack.c.l.b16 %v325
        %v1073 = vpack.c.b16 %v1050, %v1049
        %v1074 = vpack.c.b16 %v1052, %v1051
        %v1075 = vpack.c.b16 %v1054, %v1053
        %v1076 = vpack.c.b16 %v1056, %v1055
        %v1077 = vpack.c.b16 %v1058, %v1057
        %v1078 = vpack.c.b16 %v1060, %v1059
        %v1079 = vpack.c.b16 %v1062, %v1061
        %v1080 = vpack.c.b16 %v1064, %v1063
        %v1081 = vpack.c.b16 %v1066, %v1065
        %v1082 = vpack.c.b16 %v1068, %v1067
        %v1083 = vpack.c.b16 %v1070, %v1069
        %v1084 = vpack.c.b16 %v1072, %v1071
        %v1086 = vsel %vm398, %v1073, 0
        %v1089 = vsel %vm398, %v1074, 0
        %v1092 = vsel %vm398, %v1075, 0
        %v1095 = vsel %vm398, %v1076, 0
        %v1098 = vsel %vm398, %v1077, 0
        %v1101 = vsel %vm398, %v1078, 0
        %v1104 = vsel %vm398, %v1079, 0
        %v1107 = vsel %vm398, %v1080, 0
        %v1110 = vsel %vm398, %v1081, 0
        %v1113 = vsel %vm398, %v1082, 0
        %v1116 = vsel %vm398, %v1083, 0
        %v1119 = vsel %vm398, %v1084, 0
        %1121 = vmatprep.subr.bf16.mxu0 %v898
        %1122 = vmatpush1.bf16.msra.mxu0 %v897
        %1123 = vmatprep.subr.bf16.mxu0 %v900
        %1124 = vmatpush1.bf16.msra.mxu0 %v899
        %1125 = vmatprep.subr.bf16.mxu0 %v902
        %1126 = vmatpush1.bf16.msra.mxu0 %v901
        %1127 = vmatprep.subr.bf16.mxu0 %v904
        %1128 = vmatpush1.bf16.msra.mxu0 %v903
        %1129 = vmatprep.subr.bf16.mxu0 0
        %1130 = vmatpush1.bf16.msra.mxu0 0
        %1131 = vmatprep.subr.bf16.mxu0 0
        %1132 = vmatpush1.bf16.msra.mxu0 0
        %1133 = vmatprep.subr.bf16.mxu0 0
        %1134 = vmatpush1.bf16.msra.mxu0 0
        %1135 = vmatprep.subr.bf16.mxu0 0
        %1136 = vmatpush1.bf16.msra.mxu0 0
        %1137 = vmatprep.subr.bf16.mxu0 0
        %1138 = vmatpush1.bf16.msra.mxu0 0
        %1139 = vmatprep.subr.bf16.mxu0 0
        %1140 = vmatpush1.bf16.msra.mxu0 0
        %1141 = vmatprep.subr.bf16.mxu0 0
        %1142 = vmatpush1.bf16.msra.mxu0 0
        %1143 = vmatprep.subr.bf16.mxu0 0
        %1144 = vmatpush1.bf16.msra.mxu0 0
        %1145 = vmatprep.subr.bf16.mxu0 0
        %1146 = vmatpush1.bf16.msra.mxu0 0
        %1147 = vmatprep.subr.bf16.mxu0 0
        %1148 = vmatpush1.bf16.msra.mxu0 0
        %1149 = vmatprep.subr.bf16.mxu0 0
        %1150 = vmatpush1.bf16.msra.mxu0 0
        %1151 = vmatprep.subr.bf16.mxu0 0
        %1152 = vmatpush1.bf16.msra.mxu0 0
        %1153 = vmatprep.mubr.bf16.mxu0 0
        %1154 = vmatmul.mubr.bf16.gmra.mrb[0].mxu0 %v1086
        %v1155 = vpop.f32.mrb[0].mxu0
        %v1156 = vadd.f32 %v908, %v1155
        %v1157 = vpop.f32.mrb[0].mxu0
        %v1158 = vadd.f32 %v908, %v1157
        %v1159 = vpop.f32.mrb[0].mxu0
        %v1160 = vadd.f32 %v913, %v1159
        %v1161 = vpop.f32.mrb[0].mxu0
        %v1162 = vadd.f32 %v913, %v1161
        %1163 = vmatprep.mubr.bf16.mxu0 0
        %1164 = vmatmul.mubr.bf16.gmra.mrb[0].mxu0 %v1089
        %v1165 = vpop.f32.mrb[0].mxu0
        %v1166 = vadd.f32 %v918, %v1165
        %v1167 = vpop.f32.mrb[0].mxu0
        %v1168 = vadd.f32 %v918, %v1167
        %v1169 = vpop.f32.mrb[0].mxu0
        %v1170 = vadd.f32 %v923, %v1169
        %v1171 = vpop.f32.mrb[0].mxu0
        %v1172 = vadd.f32 %v923, %v1171
        %1173 = vmatprep.mubr.bf16.mxu0 0
        %1174 = vmatmul.mubr.bf16.gmra.mrb[0].mxu0 %v1092
        %v1175 = vpop.f32.mrb[0].mxu0
        %v1176 = vadd.f32 %v928, %v1175
        %v1177 = vpop.f32.mrb[0].mxu0
        %v1178 = vadd.f32 %v928, %v1177
        %v1179 = vpop.f32.mrb[0].mxu0
        %v1180 = vadd.f32 %v933, %v1179
        %v1181 = vpop.f32.mrb[0].mxu0
        %v1182 = vadd.f32 %v933, %v1181
        %1183 = vmatprep.mubr.bf16.mxu0 0
        %1184 = vmatmul.mubr.bf16.gmra.mrb[0].mxu0 %v1095
        %v1185 = vpop.f32.mrb[0].mxu0
        %v1186 = vadd.f32 %v938, %v1185
        %v1187 = vpop.f32.mrb[0].mxu0
        %v1188 = vadd.f32 %v938, %v1187
        %v1189 = vpop.f32.mrb[0].mxu0
        %v1190 = vadd.f32 %v943, %v1189
        %v1191 = vpop.f32.mrb[0].mxu0
        %v1192 = vadd.f32 %v943, %v1191
        %1193 = vmatprep.mubr.bf16.mxu0 0
        %1194 = vmatmul.mubr.bf16.gmra.mrb[0].mxu0 %v1098
        %v1195 = vpop.f32.mrb[0].mxu0
        %v1196 = vadd.f32 %v948, %v1195
        %v1197 = vpop.f32.mrb[0].mxu0
        %v1198 = vadd.f32 %v948, %v1197
        %v1199 = vpop.f32.mrb[0].mxu0
        %v1200 = vadd.f32 %v953, %v1199
        %v1201 = vpop.f32.mrb[0].mxu0
        %v1202 = vadd.f32 %v953, %v1201
        %1203 = vmatprep.mubr.bf16.mxu0 0
        %1204 = vmatmul.mubr.bf16.gmra.mrb[0].mxu0 %v1101
        %v1205 = vpop.f32.mrb[0].mxu0
        %v1206 = vadd.f32 %v958, %v1205
        %v1207 = vpop.f32.mrb[0].mxu0
        %v1208 = vadd.f32 %v958, %v1207
        %v1209 = vpop.f32.mrb[0].mxu0
        %v1210 = vadd.f32 %v963, %v1209
        %v1211 = vpop.f32.mrb[0].mxu0
        %v1212 = vadd.f32 %v963, %v1211
        %1213 = vmatprep.mubr.bf16.mxu0 0
        %1214 = vmatmul.mubr.bf16.gmra.mrb[0].mxu0 %v1104
        %v1215 = vpop.f32.mrb[0].mxu0
        %v1216 = vadd.f32 %v968, %v1215
        %v1217 = vpop.f32.mrb[0].mxu0
        %v1218 = vadd.f32 %v968, %v1217
        %v1219 = vpop.f32.mrb[0].mxu0
        %v1220 = vadd.f32 %v973, %v1219
        %v1221 = vpop.f32.mrb[0].mxu0
        %v1222 = vadd.f32 %v973, %v1221
        %1223 = vmatprep.mubr.bf16.mxu0 0
        %1224 = vmatmul.mubr.bf16.gmra.mrb[0].mxu0 %v1107
        %v1225 = vpop.f32.mrb[0].mxu0
        %v1226 = vadd.f32 %v978, %v1225
        %v1227 = vpop.f32.mrb[0].mxu0
        %v1228 = vadd.f32 %v978, %v1227
        %v1229 = vpop.f32.mrb[0].mxu0
        %v1230 = vadd.f32 %v983, %v1229
        %v1231 = vpop.f32.mrb[0].mxu0
        %v1232 = vadd.f32 %v983, %v1231
        %1233 = vmatprep.mubr.bf16.mxu0 0
        %1234 = vmatmul.mubr.bf16.gmra.mrb[0].mxu0 %v1110
        %v1235 = vpop.f32.mrb[0].mxu0
        %v1236 = vadd.f32 %v988, %v1235
        %v1237 = vpop.f32.mrb[0].mxu0
        %v1238 = vadd.f32 %v988, %v1237
        %v1239 = vpop.f32.mrb[0].mxu0
        %v1240 = vadd.f32 %v993, %v1239
        %v1241 = vpop.f32.mrb[0].mxu0
        %v1242 = vadd.f32 %v993, %v1241
        %1243 = vmatprep.mubr.bf16.mxu0 0
        %1244 = vmatmul.mubr.bf16.gmra.mrb[0].mxu0 %v1113
        %v1245 = vpop.f32.mrb[0].mxu0
        %v1246 = vadd.f32 %v998, %v1245
        %v1247 = vpop.f32.mrb[0].mxu0
        %v1248 = vadd.f32 %v998, %v1247
        %v1249 = vpop.f32.mrb[0].mxu0
        %v1250 = vadd.f32 %v1003, %v1249
        %v1251 = vpop.f32.mrb[0].mxu0
        %v1252 = vadd.f32 %v1003, %v1251
        %1253 = vmatprep.mubr.bf16.mxu0 0
        %1254 = vmatmul.mubr.bf16.gmra.mrb[0].mxu0 %v1116
        %v1255 = vpop.f32.mrb[0].mxu0
        %v1256 = vadd.f32 %v1008, %v1255
        %v1257 = vpop.f32.mrb[0].mxu0
        %v1258 = vadd.f32 %v1008, %v1257
        %v1259 = vpop.f32.mrb[0].mxu0
        %v1260 = vadd.f32 %v1013, %v1259
        %v1261 = vpop.f32.mrb[0].mxu0
        %v1262 = vadd.f32 %v1013, %v1261
        %1263 = vmatprep.mubr.bf16.mxu0 0
        %1264 = vmatmul.mubr.bf16.gmra.mrb[0].mxu0 %v1119
        %v1265 = vpop.f32.mrb[0].mxu0
        %v1266 = vadd.f32 %v1018, %v1265
        %v1267 = vpop.f32.mrb[0].mxu0
        %v1268 = vadd.f32 %v1018, %v1267
        %v1269 = vpop.f32.mrb[0].mxu0
        %v1270 = vadd.f32 %v1023, %v1269
        %v1271 = vpop.f32.mrb[0].mxu0
        %v1272 = vadd.f32 %v1023, %v1271
        %1273 = vdwg.mxu0
        %v1274 = vpack.c.bf16 %v1160, %v1156
        %v1275 = vpack.c.bf16 %v1162, %v1158
        %v1276 = vpack.c.bf16 %v1170, %v1166
        %v1277 = vpack.c.bf16 %v1172, %v1168
        %v1278 = vpack.c.bf16 %v1180, %v1176
        %v1279 = vpack.c.bf16 %v1182, %v1178
        %v1280 = vpack.c.bf16 %v1190, %v1186
        %v1281 = vpack.c.bf16 %v1192, %v1188
        %v1282 = vpack.c.bf16 %v1200, %v1196
        %v1283 = vpack.c.bf16 %v1202, %v1198
        %v1284 = vpack.c.bf16 %v1210, %v1206
        %v1285 = vpack.c.bf16 %v1212, %v1208
        %v1286 = vpack.c.bf16 %v1220, %v1216
        %v1287 = vpack.c.bf16 %v1222, %v1218
        %v1288 = vpack.c.bf16 %v1230, %v1226
        %v1289 = vpack.c.bf16 %v1232, %v1228
        %1290 = vmatprep.subr.bf16.mxu0 %v1283
        %1291 = vmatpush1.bf16.xpose.msra.mxu0 %v1282
        %1292 = vmatprep.subr.bf16.mxu0 %v1285
        %1293 = vmatpush1.bf16.xpose.msra.mxu0 %v1284
        %1294 = vmatprep.subr.bf16.mxu0 %v1287
        %1295 = vmatpush1.bf16.xpose.msra.mxu0 %v1286
        %1296 = vmatprep.subr.bf16.mxu0 %v1289
        %1297 = vmatpush1.bf16.xpose.msra.mxu0 %v1288
        %1298 = vmatprep.subr.bf16.mxu0 0
        %1299 = vmatpush1.bf16.xpose.msra.mxu0 0
        %1300 = vmatprep.subr.bf16.mxu0 0
        %1301 = vmatpush1.bf16.xpose.msra.mxu0 0
        %1302 = vmatprep.subr.bf16.mxu0 0
        %1303 = vmatpush1.bf16.xpose.msra.mxu0 0
        %1304 = vmatprep.subr.bf16.mxu0 0
        %1305 = vmatpush1.bf16.xpose.msra.mxu0 0
        %1306 = vmatprep.subr.bf16.mxu0 0
        %1307 = vmatpush1.bf16.xpose.msra.mxu0 0
        %1308 = vmatprep.subr.bf16.mxu0 0
        %1309 = vmatpush1.bf16.xpose.msra.mxu0 0
        %1310 = vmatprep.subr.bf16.mxu0 0
        %1311 = vmatpush1.bf16.xpose.msra.mxu0 0
        %1312 = vmatprep.subr.bf16.mxu0 0
        %1313 = vmatpush1.bf16.xpose.msra.mxu0 0
        %1314 = vmatprep.subr.bf16.mxu0 0
        %1315 = vmatpush1.bf16.xpose.msra.mxu0 0
        %1316 = vmatprep.subr.bf16.mxu0 0
        %1317 = vmatpush1.bf16.xpose.msra.mxu0 0
        %1318 = vmatprep.subr.bf16.mxu0 0
        %1319 = vmatpush1.bf16.xpose.msra.mxu0 0
        %1320 = vmatprep.subr.bf16.mxu0 0
        %1321 = vmatpush1.bf16.xpose.msra.mxu0 0
        %1322 = vmatprep.mubr.bf16.mxu0 %v1275
        %1323 = vmatmul.mubr.bf16.gmra.mrb[0].mxu0 %v1274
        %v1324 = vpop.f32.mrb[0].mxu0
        %v1325 = vadd.f32 %v278, %v1324
        %v1326 = vpop.f32.mrb[0].mxu0
        %v1327 = vpop.f32.mrb[0].mxu0
        %v1328 = vadd.f32 %v279, %v1327
        %v1329 = vpop.f32.mrb[0].mxu0
        %1330 = vmatprep.mubr.bf16.mxu0 %v1277
        %1331 = vmatmul.mubr.bf16.gmra.mrb[0].mxu0 %v1276
        %v1332 = vpop.f32.mrb[0].mxu0
        %v1333 = vadd.f32 %v280, %v1332
        %v1334 = vpop.f32.mrb[0].mxu0
        %v1335 = vpop.f32.mrb[0].mxu0
        %v1336 = vadd.f32 %v281, %v1335
        %v1337 = vpop.f32.mrb[0].mxu0
        %1338 = vmatprep.mubr.bf16.mxu0 %v1279
        %1339 = vmatmul.mubr.bf16.gmra.mrb[0].mxu0 %v1278
        %v1340 = vpop.f32.mrb[0].mxu0
        %v1341 = vadd.f32 %v282, %v1340
        %v1342 = vpop.f32.mrb[0].mxu0
        %v1343 = vpop.f32.mrb[0].mxu0
        %v1344 = vadd.f32 %v283, %v1343
        %v1345 = vpop.f32.mrb[0].mxu0
        %1346 = vmatprep.mubr.bf16.mxu0 %v1281
        %1347 = vmatmul.mubr.bf16.gmra.mrb[0].mxu0 %v1280
        %v1348 = vpop.f32.mrb[0].mxu0
        %v1349 = vadd.f32 %v284, %v1348
        %v1350 = vpop.f32.mrb[0].mxu0
        %v1351 = vpop.f32.mrb[0].mxu0
        %v1352 = vadd.f32 %v285, %v1351
        %v1353 = vpop.f32.mrb[0].mxu0
        %1354 = vdwg.mxu0
        %v1355 = vsel %vm398, %v1325, -inf
        %1356 = vmax.xlane.f32.xlu0 %v1355
        %v1357 = vpop.xlane.xlu0 %1356
        %v1358 = vsel %vm398, %v1328, -inf
        %1359 = vmax.xlane.f32.xlu0 %v1358
        %v1360 = vpop.xlane.xlu0 %1359
        %v1361 = vsel %vm398, %v1333, -inf
        %1362 = vmax.xlane.f32.xlu0 %v1361
        %v1363 = vpop.xlane.xlu0 %1362
        %v1364 = vsel %vm398, %v1336, -inf
        %1365 = vmax.xlane.f32.xlu0 %v1364
        %v1366 = vpop.xlane.xlu0 %1365
        %v1367 = vsel %vm398, %v1341, -inf
        %1368 = vmax.xlane.f32.xlu0 %v1367
        %v1369 = vpop.xlane.xlu0 %1368
        %v1370 = vsel %vm398, %v1344, -inf
        %1371 = vmax.xlane.f32.xlu0 %v1370
        %v1372 = vpop.xlane.xlu0 %1371
        %v1373 = vsel %vm398, %v1349, -inf
        %1374 = vmax.xlane.f32.xlu0 %v1373
        %v1375 = vpop.xlane.xlu0 %1374
        %v1376 = vsel %vm398, %v1352, -inf
        %1377 = vmax.xlane.f32.xlu0 %v1376
        %v1378 = vpop.xlane.xlu0 %1377
        %v1379 = vsub.f32 %v1325, %v1357
        %v1380 = vsub.f32 %v1328, %v1360
        %v1381 = vsub.f32 %v1333, %v1363
        %v1382 = vsub.f32 %v1336, %v1366
        %v1383 = vsub.f32 %v1341, %v1369
        %v1384 = vsub.f32 %v1344, %v1372
        %v1385 = vsub.f32 %v1349, %v1375
        %v1386 = vsub.f32 %v1352, %v1378
        %v1387 = vmul.f32 %v1379, 1.442695
        %v1388 = vpow.pop %v1387
        %v1389 = vmul.f32 %v1380, 1.442695
        %v1390 = vpow.pop %v1389
        %v1391 = vmul.f32 %v1381, 1.442695
        %v1392 = vpow.pop %v1391
        %v1393 = vmul.f32 %v1382, 1.442695
        %v1394 = vpow.pop %v1393
        %v1395 = vmul.f32 %v1383, 1.442695
        %v1396 = vpow.pop %v1395
        %v1397 = vmul.f32 %v1384, 1.442695
        %v1398 = vpow.pop %v1397
        %v1399 = vmul.f32 %v1385, 1.442695
        %v1400 = vpow.pop %v1399
        %v1401 = vmul.f32 %v1386, 1.442695
        %v1402 = vpow.pop %v1401
        %v1403 = vsel %vm398, %v1388, 0.0
        %1404 = vadd.xlane.f32.xlu0 %v1403
        %v1405 = vpop.xlane.xlu0 %1404
        %v1406 = vsel %vm398, %v1390, 0.0
        %1407 = vadd.xlane.f32.xlu0 %v1406
        %v1408 = vpop.xlane.xlu0 %1407
        %v1409 = vsel %vm398, %v1392, 0.0
        %1410 = vadd.xlane.f32.xlu0 %v1409
        %v1411 = vpop.xlane.xlu0 %1410
        %v1412 = vsel %vm398, %v1394, 0.0
        %1413 = vadd.xlane.f32.xlu0 %v1412
        %v1414 = vpop.xlane.xlu0 %1413
        %v1415 = vsel %vm398, %v1396, 0.0
        %1416 = vadd.xlane.f32.xlu0 %v1415
        %v1417 = vpop.xlane.xlu0 %1416
        %v1418 = vsel %vm398, %v1398, 0.0
        %1419 = vadd.xlane.f32.xlu0 %v1418
        %v1420 = vpop.xlane.xlu0 %1419
        %v1421 = vsel %vm398, %v1400, 0.0
        %1422 = vadd.xlane.f32.xlu0 %v1421
        %v1423 = vpop.xlane.xlu0 %1422
        %v1424 = vsel %vm398, %v1402, 0.0
        %1425 = vadd.xlane.f32.xlu0 %v1424
        %v1426 = vpop.xlane.xlu0 %1425
        %v1427 = vrcp.pop %v1405
        %v1428 = vrcp.pop %v1408
        %v1429 = vrcp.pop %v1411
        %v1430 = vrcp.pop %v1414
        %v1431 = vrcp.pop %v1417
        %v1432 = vrcp.pop %v1420
        %v1433 = vrcp.pop %v1423
        %v1434 = vrcp.pop %v1426
        %v1435 = vmul.f32 %v1388, %v1427
        %v1436 = vmul.f32 %v1390, %v1428
        %v1437 = vmul.f32 %v1392, %v1429
        %v1438 = vmul.f32 %v1394, %v1430
        %v1439 = vmul.f32 %v1396, %v1431
        %v1440 = vmul.f32 %v1398, %v1432
        %v1441 = vmul.f32 %v1400, %v1433
        %v1442 = vmul.f32 %v1402, %v1434
        %v1443 = vpack.c.bf16 %v1436, %v1435
        %v1444 = vpack.c.bf16 %v1438, %v1437
        %v1445 = vpack.c.bf16 %v1440, %v1439
        %v1446 = vpack.c.bf16 %v1442, %v1441
        %v1447 = vpack.c.bf16 %v1240, %v1236
        %v1448 = vpack.c.bf16 %v1242, %v1238
        %v1449 = vpack.c.bf16 %v1250, %v1246
        %v1450 = vpack.c.bf16 %v1252, %v1248
        %v1451 = vpack.c.bf16 %v1260, %v1256
        %v1452 = vpack.c.bf16 %v1262, %v1258
        %v1453 = vpack.c.bf16 %v1270, %v1266
        %v1454 = vpack.c.bf16 %v1272, %v1268
        %v1456 = vsel %vm398, %v1443, 0
        %v1459 = vsel %vm398, %v1444, 0
        %v1462 = vsel %vm398, %v1445, 0
        %v1465 = vsel %vm398, %v1446, 0
        %1467 = vmatprep.subr.bf16.mxu0 %v1448
        %1468 = vmatpush1.bf16.msra.mxu0 %v1447
        %1469 = vmatprep.subr.bf16.mxu0 %v1450
        %1470 = vmatpush1.bf16.msra.mxu0 %v1449
        %1471 = vmatprep.subr.bf16.mxu0 %v1452
        %1472 = vmatpush1.bf16.msra.mxu0 %v1451
        %1473 = vmatprep.subr.bf16.mxu0 %v1454
        %1474 = vmatpush1.bf16.msra.mxu0 %v1453
        %1475 = vmatprep.subr.bf16.mxu0 0
        %1476 = vmatpush1.bf16.msra.mxu0 0
        %1477 = vmatprep.subr.bf16.mxu0 0
        %1478 = vmatpush1.bf16.msra.mxu0 0
        %1479 = vmatprep.subr.bf16.mxu0 0
        %1480 = vmatpush1.bf16.msra.mxu0 0
        %1481 = vmatprep.subr.bf16.mxu0 0
        %1482 = vmatpush1.bf16.msra.mxu0 0
        %1483 = vmatprep.subr.bf16.mxu0 0
        %1484 = vmatpush1.bf16.msra.mxu0 0
        %1485 = vmatprep.subr.bf16.mxu0 0
        %1486 = vmatpush1.bf16.msra.mxu0 0
        %1487 = vmatprep.subr.bf16.mxu0 0
        %1488 = vmatpush1.bf16.msra.mxu0 0
        %1489 = vmatprep.subr.bf16.mxu0 0
        %1490 = vmatpush1.bf16.msra.mxu0 0
        %1491 = vmatprep.subr.bf16.mxu0 0
        %1492 = vmatpush1.bf16.msra.mxu0 0
        %1493 = vmatprep.subr.bf16.mxu0 0
        %1494 = vmatpush1.bf16.msra.mxu0 0
        %1495 = vmatprep.subr.bf16.mxu0 0
        %1496 = vmatpush1.bf16.msra.mxu0 0
        %1497 = vmatprep.subr.bf16.mxu0 0
        %1498 = vmatpush1.bf16.msra.mxu0 0
        %1499 = vmatprep.mubr.bf16.mxu0 0
        %1500 = vmatmul.mubr.bf16.gmra.mrb[0].mxu0 %v1456
        %v1501 = vpop.f32.mrb[0].mxu0
        %v1502 = vadd.f32 0.0, %v1501
        %v1503 = vpop.f32.mrb[0].mxu0
        %v1504 = vadd.f32 0.0, %v1503
        %v1505 = vpop.f32.mrb[0].mxu0
        %v1506 = vadd.f32 0.0, %v1505
        %v1507 = vpop.f32.mrb[0].mxu0
        %v1508 = vadd.f32 0.0, %v1507
        %1509 = vmatprep.mubr.bf16.mxu0 0
        %1510 = vmatmul.mubr.bf16.gmra.mrb[0].mxu0 %v1459
        %v1511 = vpop.f32.mrb[0].mxu0
        %v1512 = vadd.f32 0.0, %v1511
        %v1513 = vpop.f32.mrb[0].mxu0
        %v1514 = vadd.f32 0.0, %v1513
        %v1515 = vpop.f32.mrb[0].mxu0
        %v1516 = vadd.f32 0.0, %v1515
        %v1517 = vpop.f32.mrb[0].mxu0
        %v1518 = vadd.f32 0.0, %v1517
        %1519 = vmatprep.mubr.bf16.mxu0 0
        %1520 = vmatmul.mubr.bf16.gmra.mrb[0].mxu0 %v1462
        %v1521 = vpop.f32.mrb[0].mxu0
        %v1522 = vadd.f32 0.0, %v1521
        %v1523 = vpop.f32.mrb[0].mxu0
        %v1524 = vadd.f32 0.0, %v1523
        %v1525 = vpop.f32.mrb[0].mxu0
        %v1526 = vadd.f32 0.0, %v1525
        %v1527 = vpop.f32.mrb[0].mxu0
        %v1528 = vadd.f32 0.0, %v1527
        %1529 = vmatprep.mubr.bf16.mxu0 0
        %1530 = vmatmul.mubr.bf16.gmra.mrb[0].mxu0 %v1465
        %v1531 = vpop.f32.mrb[0].mxu0
        %v1532 = vadd.f32 0.0, %v1531
        %v1533 = vpop.f32.mrb[0].mxu0
        %v1534 = vadd.f32 0.0, %v1533
        %v1535 = vpop.f32.mrb[0].mxu0
        %v1536 = vadd.f32 0.0, %v1535
        %v1537 = vpop.f32.mrb[0].mxu0
        %v1538 = vadd.f32 0.0, %v1537
        %1539 = vdwg.mxu0
        %v1540 = vpack.c.bf16 %v1506, %v1502
        %v1541 = vpack.c.bf16 %v1508, %v1504
        %v1542 = vpack.c.bf16 %v1516, %v1512
        %v1543 = vpack.c.bf16 %v1518, %v1514
        %v1544 = vpack.c.bf16 %v1526, %v1522
        %v1545 = vpack.c.bf16 %v1528, %v1524
        %v1546 = vpack.c.bf16 %v1536, %v1532
        %v1547 = vpack.c.bf16 %v1538, %v1534
        %1548 = vset.pattern.permute.xlu0 2
        %1549 = vperm.xlu0 %1548, %v294
        %v1550 = vpop.permute.xlu0 %1549
        %1552 = vset.pattern.permute.xlu0 2
        %1553 = vperm.xlu0 %1552, %v295
        %v1554 = vpop.permute.xlu0 %1553
        %1556 = vset.pattern.permute.xlu0 2
        %1557 = vperm.xlu0 %1556, %v296
        %v1558 = vpop.permute.xlu0 %1557
        %1560 = vset.pattern.permute.xlu0 2
        %1561 = vperm.xlu0 %1560, %v297
        %v1562 = vpop.permute.xlu0 %1561
        %1564 = vset.pattern.permute.xlu0 2
        %1565 = vperm.xlu0 %1564, %v298
        %v1566 = vpop.permute.xlu0 %1565
        %1568 = vset.pattern.permute.xlu0 2
        %1569 = vperm.xlu0 %1568, %v299
        %v1570 = vpop.permute.xlu0 %1569
        %1572 = vset.pattern.permute.xlu0 2
        %1573 = vperm.xlu0 %1572, %v300
        %v1574 = vpop.permute.xlu0 %1573
        %1576 = vset.pattern.permute.xlu0 2
        %1577 = vperm.xlu0 %1576, %v301
        %v1578 = vpop.permute.xlu0 %1577
        %v1588 = vunpack.c.l.b16 %v350
        %v1589 = vunpack.c.l.b16 %v351
        %v1590 = vunpack.c.l.b16 %v352
        %v1591 = vunpack.c.l.b16 %v353
        %v1592 = vunpack.c.l.b16 %v354
        %v1593 = vunpack.c.l.b16 %v355
        %v1594 = vunpack.c.l.b16 %v356
        %v1595 = vunpack.c.l.b16 %v357
        %v1596 = vpack.c.b16 %v1589, %v1588
        %v1597 = vpack.c.b16 %v1591, %v1590
        %v1598 = vpack.c.b16 %v1593, %v1592
        %v1599 = vpack.c.b16 %v1595, %v1594
        %v1601 = vsel %vm398, %v1596, 0
        %v1604 = vsel %vm398, %v1597, 0
        %v1607 = vsel %vm398, %v1598, 0
        %v1610 = vsel %vm398, %v1599, 0
        %1612 = vmatprep.subr.bf16.mxu0 %v1541
        %1613 = vmatpush1.bf16.msra.mxu0 %v1540
        %1614 = vmatprep.subr.bf16.mxu0 %v1543
        %1615 = vmatpush1.bf16.msra.mxu0 %v1542
        %1616 = vmatprep.subr.bf16.mxu0 %v1545
        %1617 = vmatpush1.bf16.msra.mxu0 %v1544
        %1618 = vmatprep.subr.bf16.mxu0 %v1547
        %1619 = vmatpush1.bf16.msra.mxu0 %v1546
        %1620 = vmatprep.subr.bf16.mxu0 0
        %1621 = vmatpush1.bf16.msra.mxu0 0
        %1622 = vmatprep.subr.bf16.mxu0 0
        %1623 = vmatpush1.bf16.msra.mxu0 0
        %1624 = vmatprep.subr.bf16.mxu0 0
        %1625 = vmatpush1.bf16.msra.mxu0 0
        %1626 = vmatprep.subr.bf16.mxu0 0
        %1627 = vmatpush1.bf16.msra.mxu0 0
        %1628 = vmatprep.subr.bf16.mxu0 0
        %1629 = vmatpush1.bf16.msra.mxu0 0
        %1630 = vmatprep.subr.bf16.mxu0 0
        %1631 = vmatpush1.bf16.msra.mxu0 0
        %1632 = vmatprep.subr.bf16.mxu0 0
        %1633 = vmatpush1.bf16.msra.mxu0 0
        %1634 = vmatprep.subr.bf16.mxu0 0
        %1635 = vmatpush1.bf16.msra.mxu0 0
        %1636 = vmatprep.subr.bf16.mxu0 0
        %1637 = vmatpush1.bf16.msra.mxu0 0
        %1638 = vmatprep.subr.bf16.mxu0 0
        %1639 = vmatpush1.bf16.msra.mxu0 0
        %1640 = vmatprep.subr.bf16.mxu0 0
        %1641 = vmatpush1.bf16.msra.mxu0 0
        %1642 = vmatprep.subr.bf16.mxu0 0
        %1643 = vmatpush1.bf16.msra.mxu0 0
        %1644 = vmatprep.mubr.bf16.mxu0 0
        %1645 = vmatmul.mubr.bf16.gmra.mrb[0].mxu0 %v1601
        %v1646 = vpop.f32.mrb[0].mxu0
        %v1647 = vadd.f32 %v1550, %v1646
        %v1648 = vpop.f32.mrb[0].mxu0
        %v1649 = vadd.f32 %v1550, %v1648
        %v1650 = vpop.f32.mrb[0].mxu0
        %v1651 = vadd.f32 %v1554, %v1650
        %v1652 = vpop.f32.mrb[0].mxu0
        %v1653 = vadd.f32 %v1554, %v1652
        %1654 = vmatprep.mubr.bf16.mxu0 0
        %1655 = vmatmul.mubr.bf16.gmra.mrb[0].mxu0 %v1604
        %v1656 = vpop.f32.mrb[0].mxu0
        %v1657 = vadd.f32 %v1558, %v1656
        %v1658 = vpop.f32.mrb[0].mxu0
        %v1659 = vadd.f32 %v1558, %v1658
        %v1660 = vpop.f32.mrb[0].mxu0
        %v1661 = vadd.f32 %v1562, %v1660
        %v1662 = vpop.f32.mrb[0].mxu0
        %v1663 = vadd.f32 %v1562, %v1662
        %1664 = vmatprep.mubr.bf16.mxu0 0
        %1665 = vmatmul.mubr.bf16.gmra.mrb[0].mxu0 %v1607
        %v1666 = vpop.f32.mrb[0].mxu0
        %v1667 = vadd.f32 %v1566, %v1666
        %v1668 = vpop.f32.mrb[0].mxu0
        %v1669 = vadd.f32 %v1566, %v1668
        %v1670 = vpop.f32.mrb[0].mxu0
        %v1671 = vadd.f32 %v1570, %v1670
        %v1672 = vpop.f32.mrb[0].mxu0
        %v1673 = vadd.f32 %v1570, %v1672
        %1674 = vmatprep.mubr.bf16.mxu0 0
        %1675 = vmatmul.mubr.bf16.gmra.mrb[0].mxu0 %v1610
        %v1676 = vpop.f32.mrb[0].mxu0
        %v1677 = vadd.f32 %v1574, %v1676
        %v1678 = vpop.f32.mrb[0].mxu0
        %v1679 = vadd.f32 %v1574, %v1678
        %v1680 = vpop.f32.mrb[0].mxu0
        %v1681 = vadd.f32 %v1578, %v1680
        %v1682 = vpop.f32.mrb[0].mxu0
        %v1683 = vadd.f32 %v1578, %v1682
        %1684 = vdwg.mxu0
        %v1685 = vadd.f32 %v358, %v1647
        %v1686 = vadd.f32 %v359, %v1649
        %v1687 = vadd.f32 %v360, %v1651
        %v1688 = vadd.f32 %v361, %v1653
        %v1689 = vadd.f32 %v362, %v1657
        %v1690 = vadd.f32 %v363, %v1659
        %v1691 = vadd.f32 %v364, %v1661
        %v1692 = vadd.f32 %v365, %v1663
        %v1693 = vadd.f32 %v366, %v1667
        %v1694 = vadd.f32 %v367, %v1669
        %v1695 = vadd.f32 %v368, %v1671
        %v1696 = vadd.f32 %v369, %v1673
        %v1697 = vadd.f32 %v370, %v1677
        %v1698 = vadd.f32 %v371, %v1679
        %v1699 = vadd.f32 %v372, %v1681
        %v1700 = vadd.f32 %v373, %v1683
        %1701 = vst [vmem:[%s271] sm:$0xff] %v1685
        %1702 = vst [vmem:[%s271 + $0x8] sm:$0xff] %v1686
        %1703 = vst [vmem:[%s271 + $0x10] sm:$0xff] %v1687
        %1704 = vst [vmem:[%s271 + $0x18] sm:$0xff] %v1688
        %1705 = vst [vmem:[%s271 + $0x20] sm:$0xff] %v1689
        %1706 = vst [vmem:[%s271 + $0x28] sm:$0xff] %v1690
        %1707 = vst [vmem:[%s271 + $0x30] sm:$0xff] %v1691
        %1708 = vst [vmem:[%s271 + $0x38] sm:$0xff] %v1692
        %1709 = vst [vmem:[%s271 + $0x40] sm:$0xff] %v1693
        %1710 = vst [vmem:[%s271 + $0x48] sm:$0xff] %v1694
        %1711 = vst [vmem:[%s271 + $0x50] sm:$0xff] %v1695
        %1712 = vst [vmem:[%s271 + $0x58] sm:$0xff] %v1696
        %1713 = vst [vmem:[%s271 + $0x60] sm:$0xff] %v1697
        %1714 = vst [vmem:[%s271 + $0x68] sm:$0xff] %v1698
        %1715 = vst [vmem:[%s271 + $0x70] sm:$0xff] %v1699
        %1716 = vst [vmem:[%s271 + $0x78] sm:$0xff] %v1700
        %s1717 = sand.u32 %s181, 1
        %s1718 = scalar_lea.sflag [#allocation3], %s1717
        %s1719 = sand.u32 %s181, 1
        %s1720 = smul.addr %s1719, 128
        %s1721 = scalar_lea.vmem [#allocation2], %s1720
        // Predicated region
        $region49: #{tpu_custom_call.1} parent=47 // pred_check
          %p1722 = pneg %p191
        $region50: #{tpu_custom_call.1} parent=47 // pred_check_branch
          %1724 = sbr.rel (%p1722) target = $region52
        $region51: #{tpu_custom_call.1} parent=47 // pred_region
          %s1726 = ssub.s32 2048, 2048
          %1727 = vsyncadd %s1718, %s1726
          %s1728 = smul.addr %s21, 16
          %s1729 = smul.addr %s1728, 128
          %s1730 = scalar_lea.hbm %s7, %s1729
          %s1731 = sshll.u32 %s1721, 4
          %s1732 = int_to_ptr.vmem [resolvable:$true] %s1731
          %1737 = dma.vmem_to_hbm [thread:$0]  %s1732, 2048, %s1730, %s1718, 256, 256, 16
        $region52: #{tpu_custom_call.1} parent=47 // pred_fallthru
          _
      $region48: #{tpu_custom_call.1} parent=5 // pred_fallthru
        _
      %p1738 = scmp.le.s32.totalorder 2, %s16
      // Predicated region
      $region53: #{tpu_custom_call.1} parent=5 // pred_check
        %p1739 = pneg %p1738
      $region54: #{tpu_custom_call.1} parent=5 // pred_check_branch
        %1741 = sbr.rel (%p1739) target = $region56
      $region55: #{tpu_custom_call.1} parent=5 // pred_region
        %s1742 = ssub.s32 %s16, 2
        // Predicated region
        $region57: #{tpu_custom_call.1} parent=55 // pred_check
          %p1743 = pneg %p197
        $region58: #{tpu_custom_call.1} parent=55 // pred_check_branch
          %1745 = sbr.rel (%p1743) target = $region60
        $region59: #{tpu_custom_call.1} parent=55 // pred_region
          %s1746 = sand.u32 %s182, 1
          %s1747 = scalar_lea.sflag [#allocation3], %s1746
          %s1748 = sand.u32 %s182, 1
          %s1749 = smul.addr %s1748, 128
          %s1750 = scalar_lea.vmem [#allocation2], %s1749
          %1751 = dma.done %s1747, 2048
        $region60: #{tpu_custom_call.1} parent=55 // pred_fallthru
          _
      $region56: #{tpu_custom_call.1} parent=5 // pred_fallthru
        _
    $region6: #{tpu_custom_call.1} parent=1 // loop_footer
      %s20 = sadd.s32 1, %s16
    $region7: #{tpu_custom_call.1} parent=1 // loop_footer_branch
      %15 = sbr.rel target = $region3
    $region8: #{tpu_custom_call.1} parent=1 // loop_exit
      _
    %1752 = vsyncpa [#allocation3], 1
    %s1753 = scalar_lea.sflag [#allocation3], 1
    %1754 = vsyncpa %s1753, 1

</llo_original>
